<compile_context>
chip_gen: v7x
topology: tpu7x:2x2x1
jax: 0.10.0
libtpu: 0.0.40
codegen_flags: <defaults>
</compile_context>

<pallas_src>
import numpy as np
import jax
import jax.numpy as jnp
from jax import lax
from jax.experimental import pallas as pl
from jax.experimental.pallas import tpu as pltpu


def _aux_head_kernel(x_ref, p_ref, w1_ref, b1_ref, w2_ref, b2_ref, o_ref):
    """Per grid step (batch_tile elements):
      x_ref : (TB, C, H*W)   input, channels on sublanes, spatial on lanes
      p_ref : (OH*OW, H*W)   avg-pool matrix (count_include_pad=True)
      w1_ref: (C, 128)       conv1 weight with BN1 scale folded in
      b1_ref: (1, 128)       BN1 bias (= -mean*inv_std), applied after pooling
      w2_ref: (128, 768)     conv2 weight with BN2 scale folded in (bf16 or f32)
      b2_ref: (1, 768)       BN2 bias
      o_ref : (TB, 1, 768)   globally avg-pooled features (lane-dense store)
    """
    tb = x_ref.shape[0]
    for b in range(tb):                                   # static unroll, small
        # ReLU on the compact lane-dense (C, hw) tile.
        xb = jnp.maximum(x_ref[b].astype(jnp.float32), 0.0)
        # conv1 BEFORE pooling (both linear -> exact swap). One small XLU
        # transpose of the (C, hw) tile; the MXU matmuls are then well shaped.
        xw = jnp.dot(xb.T, w1_ref[...],
                     preferred_element_type=jnp.float32)              # (hw, 128)
        pooled = jnp.dot(p_ref[...], xw,
                         preferred_element_type=jnp.float32)          # (ohw, 128)
        # BN1 bias must be added after pooling (border pool rows don't sum to 1).
        h1 = jnp.maximum(pooled + b1_ref[...], 0.0)
        # conv2: (ohw,128)@(128,768), bf16 operands, f32 accumulation.
        h2 = jnp.dot(h1.astype(w2_ref.dtype), w2_ref[...],
                     preferred_element_type=jnp.float32)              # (ohw, 768)
        h2 = jnp.maximum(h2 + b2_ref[...], 0.0)
        # AdaptiveAvgPool2d(1): mean over spatial positions -> (1, 768).
        o_ref[b] = jnp.mean(h2, axis=0, keepdims=True)


def _make_pool_matrix(h, w, k=5, s=3, p=2):
    """Pooling matrix for AvgPool2d(k, s, p) with count_include_pad=True."""
    oh = (h + 2 * p - k) // s + 1
    ow = (w + 2 * p - k) // s + 1
    ah = np.zeros((oh, h), np.float32)
    for i in range(oh):
        for d in range(k):
            hh = i * s - p + d
            if 0 <= hh < h:
                ah[i, hh] = 1.0
    aw = np.zeros((ow, w), np.float32)
    for j in range(ow):
        for d in range(k):
            ww = j * s - p + d
            if 0 <= ww < w:
                aw[j, ww] = 1.0
    # TODO(synk): separable (row/col) pooling would avoid the O(hw^2) kron matrix
    # for large feature maps; at H=W=16 it is only 36 KiB so kron is kept.
    pool = np.kron(ah, aw) / float(k * k)   # (OH*OW, H*W)
    return jnp.asarray(pool), oh, ow


def auxiliary_head(x_nchw, w1, m1, s1, w2, m2, s2, wfc_t, *,
                   batch_tile=None, conv_dtype=jnp.bfloat16):
    """x_nchw: (B, C, H, W) float32. Returns (B, num_classes) logits."""
    B, C, H, W = x_nchw.shape
    pool_mat, oh, ow = _make_pool_matrix(H, W)
    hw, ohw = H * W, oh * ow
    c1 = w1.shape[1]
    c2 = w2.shape[1]

    # Keep >= 2 grid steps when possible so v7x's two TensorCores both run.
    if batch_tile is None:
        batch_tile = 1 if B <= 2 else 2
    if B % batch_tile != 0:
        batch_tile = 1
    grid = (B // batch_tile,)

    # NCHW -> (B, C, H*W): a pure reshape (no transpose / HBM copy); spatial is
    # the dense lane axis inside the kernel.
    x = x_nchw.reshape(B, C, hw).astype(conv_dtype)

    # Fold eval-mode BatchNorm(affine=False) into the convs:
    #   bn(z) = (z - m) * s  ->  w' = w * s (per out-channel), bias = -m * s.
    # The per-channel scale commutes with the spatial avg-pool; the bias is
    # applied after pooling inside the kernel.
    w1s = (w1 * s1[None, :]).astype(jnp.float32)
    b1 = (-(m1 * s1)).reshape(1, c1).astype(jnp.float32)
    w2s = (w2 * s2[None, :]).astype(conv_dtype)
    b2 = (-(m2 * s2)).reshape(1, c2).astype(jnp.float32)

    feats = pl.pallas_call(
        _aux_head_kernel,
        out_shape=jax.ShapeDtypeStruct((B, 1, c2), jnp.float32),
        grid_spec=pltpu.PrefetchScalarGridSpec(
            num_scalar_prefetch=0,
            grid=grid,
            in_specs=[
                pl.BlockSpec((batch_tile, C, hw), lambda i: (i, 0, 0)),   # x
                pl.BlockSpec((ohw, hw), lambda i: (0, 0)),                # pool matrix
                pl.BlockSpec((C, c1), lambda i: (0, 0)),                  # conv1 (BN folded)
                pl.BlockSpec((1, c1), lambda i: (0, 0)),                  # BN1 bias
                pl.BlockSpec((c1, c2), lambda i: (0, 0)),                 # conv2 (BN folded)
                pl.BlockSpec((1, c2), lambda i: (0, 0)),                  # BN2 bias
            ],
            out_specs=pl.BlockSpec((batch_tile, 1, c2), lambda i: (i, 0, 0)),
        ),
        compiler_params=pltpu.CompilerParams(dimension_semantics=("parallel",)),
    )(x, pool_mat, w1s, b1, w2s, b2)

    # fc (768 -> num_classes, bias=False): tiny and lane-sparse -> done by XLA so
    # the kernel output stays lane-dense.
    g = feats.reshape(B, c2)
    return jnp.dot(g, wfc_t.astype(jnp.float32))


def _reference(x_nchw, w1, m1, s1, w2, m2, s2, wfc_t):
    """Pure-JAX f32 reference mirroring the PyTorch forward (eval-mode BN)."""
    x = jnp.maximum(x_nchw, 0.0)
    x = jnp.transpose(x, (0, 2, 3, 1))                     # NHWC
    summed = lax.reduce_window(
        x, 0.0, lax.add, (1, 5, 5, 1), (1, 3, 3, 1),
        [(0, 0), (2, 2), (2, 2), (0, 0)])
    pooled = summed / 25.0                                 # count_include_pad=True
    h1 = jnp.einsum('bhwc,cd->bhwd', pooled, w1)
    h1 = jnp.maximum((h1 - m1) * s1, 0.0)
    h2 = jnp.einsum('bhwc,cd->bhwd', h1, w2)
    h2 = jnp.maximum((h2 - m2) * s2, 0.0)
    g = jnp.mean(h2, axis=(1, 2))
    return g @ wfc_t


if __name__ == "__main__":
    key = jax.random.PRNGKey(0)
    ks = jax.random.split(key, 8)

    C, H, W = 4, 16, 16
    C1, C2, NCLS = 128, 768, 10     # fixed by the module's __init__
    eps = 1e-5

    # Conv2d(Cin, Cout, 1, bias=False) weight (Cout, Cin, 1, 1) stored as (Cin, Cout).
    w1 = jax.random.normal(ks[1], (C, C1), jnp.float32) * 0.1
    w2 = jax.random.normal(ks[2], (C1, C2), jnp.float32) * 0.05
    # fc: Linear(768, 10, bias=False); PyTorch weight (10, 768) -> pass transpose.
    wfc = jax.random.normal(ks[3], (NCLS, C2), jnp.float32) * 0.02
    wfc_t = wfc.T
    # Eval-mode BatchNorm2d(affine=False) buffers. Non-trivial running stats are
    # used so the BN-folding / pool-commute math is genuinely exercised
    # (a freshly constructed module would have mean=0, var=1).
    m1 = jax.random.normal(ks[4], (C1,), jnp.float32) * 0.1
    s1 = 1.0 / jnp.sqrt(jax.random.uniform(ks[5], (C1,), jnp.float32, 0.5, 1.5) + eps)
    m2 = jax.random.normal(ks[6], (C2,), jnp.float32) * 0.1
    s2 = 1.0 / jnp.sqrt(jax.random.uniform(ks[7], (C2,), jnp.float32, 0.5, 1.5) + eps)

    # 1) Exact-math check on the f32 path:
    #    B=2 -> batch_tile=1, grid=(2,);  B=4 -> batch_tile=2, grid=(2,).
    for bsz in (2, 4):
        x = jax.random.normal(jax.random.fold_in(ks[0], bsz),
                              (bsz, C, H, W), jnp.float32)
        out = jax.block_until_ready(
            auxiliary_head(x, w1, m1, s1, w2, m2, s2, wfc_t,
                           conv_dtype=jnp.float32))
        ref = _reference(x, w1, m1, s1, w2, m2, s2, wfc_t)
        assert out.shape == (bsz, NCLS), out.shape
        max_err = float(jnp.max(jnp.abs(out - ref)))
        assert jnp.allclose(out, ref, atol=1e-4, rtol=1e-4), (bsz, max_err)

    # 2) Default fast path (bf16 x / conv2 operands, f32 accumulation):
    #    loose sanity tolerance against the f32 reference.
    x = jax.random.normal(jax.random.fold_in(ks[0], 2), (2, C, H, W), jnp.float32)
    out = jax.block_until_ready(
        auxiliary_head(x, w1, m1, s1, w2, m2, s2, wfc_t))
    ref = _reference(x, w1, m1, s1, w2, m2, s2, wfc_t)
    scale = float(jnp.max(jnp.abs(ref)))
    err = float(jnp.max(jnp.abs(out - ref)))
    assert out.shape == (2, NCLS), out.shape
    assert err <= 5e-2 * scale + 1e-3, (err, scale)

    print("KERNEL_OK")
</pallas_src>

<mosaic_0001>
module attributes {stable_mosaic.version = 11 : i64} {
  func.func @_aux_head_kernel(%arg0: i32, %arg1: memref<1x4x256xf32, #tpu.memory_space<vmem>>, %arg2: memref<36x256xf32, #tpu.memory_space<vmem>>, %arg3: memref<4x128xf32, #tpu.memory_space<vmem>>, %arg4: memref<1x128xf32, #tpu.memory_space<vmem>>, %arg5: memref<128x768xf32, #tpu.memory_space<vmem>>, %arg6: memref<1x768xf32, #tpu.memory_space<vmem>>, %arg7: memref<1x1x768xf32, #tpu.memory_space<vmem>>) attributes {dimension_semantics = [#tpu.dimension_semantics<parallel>], iteration_bounds = array<i64: 2>, scalar_prefetch = 0 : i64, scratch_operands = 0 : i64, tpu.core_type = #tpu.core_type<tc>, window_params = [{transform_indices = @transform_0, window_bounds = array<i64: 1, 4, 256>}, {pipeline_mode = #tpu.pipeline_mode<synchronous>, transform_indices = @transform_1, window_bounds = array<i64: 36, 256>}, {pipeline_mode = #tpu.pipeline_mode<synchronous>, transform_indices = @transform_2, window_bounds = array<i64: 4, 128>}, {pipeline_mode = #tpu.pipeline_mode<synchronous>, transform_indices = @transform_3, window_bounds = array<i64: 1, 128>}, {pipeline_mode = #tpu.pipeline_mode<synchronous>, transform_indices = @transform_4, window_bounds = array<i64: 128, 768>}, {pipeline_mode = #tpu.pipeline_mode<synchronous>, transform_indices = @transform_5, window_bounds = array<i64: 1, 768>}, {transform_indices = @transform_6, window_bounds = array<i64: 1, 1, 768>}]} {
    %c0 = arith.constant 0 : index
    %c0_0 = arith.constant 0 : index
    %c0_1 = arith.constant 0 : index
    %0 = vector.load %arg1[%c0, %c0_0, %c0_1] : memref<1x4x256xf32, #tpu.memory_space<vmem>>, vector<1x4x256xf32>
    %1 = vector.shape_cast %0 : vector<1x4x256xf32> to vector<4x256xf32>
    %cst = arith.constant 0.000000e+00 : f32
    %2 = vector.broadcast %cst : f32 to vector<4x256xf32>
    %3 = arith.maximumf %1, %2 : vector<4x256xf32>
    %4 = tpu.transpose %3, [1, 0] : vector<4x256xf32> -> vector<256x4xf32>
    %c0_2 = arith.constant 0 : index
    %c0_3 = arith.constant 0 : index
    %5 = vector.load %arg3[%c0_2, %c0_3] : memref<4x128xf32, #tpu.memory_space<vmem>>, vector<4x128xf32>
    %cst_4 = arith.constant dense<0.000000e+00> : vector<256x128xf32>
    %6 = tpu.matmul %4, %5, %cst_4 {dimension_numbers = #tpu.dot_dimension_numbers<[1], [0], [0], [1], [0, 0, 1, 1], [], []>} : vector<256x4xf32>, vector<4x128xf32>, vector<256x128xf32> -> vector<256x128xf32>
    %c0_5 = arith.constant 0 : index
    %c0_6 = arith.constant 0 : index
    %7 = vector.load %arg2[%c0_5, %c0_6] : memref<36x256xf32, #tpu.memory_space<vmem>>, vector<36x256xf32>
    %cst_7 = arith.constant dense<0.000000e+00> : vector<36x128xf32>
    %8 = tpu.matmul %7, %6, %cst_7 {dimension_numbers = #tpu.dot_dimension_numbers<[1], [0], [0], [1], [0, 0, 1, 1], [], []>} : vector<36x256xf32>, vector<256x128xf32>, vector<36x128xf32> -> vector<36x128xf32>
    %c0_8 = arith.constant 0 : index
    %c0_9 = arith.constant 0 : index
    %9 = vector.load %arg4[%c0_8, %c0_9] : memref<1x128xf32, #tpu.memory_space<vmem>>, vector<1x128xf32>
    %10 = vector.broadcast %9 : vector<1x128xf32> to vector<36x128xf32>
    %11 = arith.addf %8, %10 : vector<36x128xf32>
    %cst_10 = arith.constant 0.000000e+00 : f32
    %12 = vector.broadcast %cst_10 : f32 to vector<36x128xf32>
    %13 = arith.maximumf %11, %12 : vector<36x128xf32>
    %c0_11 = arith.constant 0 : index
    %c0_12 = arith.constant 0 : index
    %14 = vector.load %arg5[%c0_11, %c0_12] : memref<128x768xf32, #tpu.memory_space<vmem>>, vector<128x768xf32>
    %cst_13 = arith.constant dense<0.000000e+00> : vector<36x768xf32>
    %15 = tpu.matmul %13, %14, %cst_13 {dimension_numbers = #tpu.dot_dimension_numbers<[1], [0], [0], [1], [0, 0, 1, 1], [], []>} : vector<36x128xf32>, vector<128x768xf32>, vector<36x768xf32> -> vector<36x768xf32>
    %c0_14 = arith.constant 0 : index
    %c0_15 = arith.constant 0 : index
    %16 = vector.load %arg6[%c0_14, %c0_15] : memref<1x768xf32, #tpu.memory_space<vmem>>, vector<1x768xf32>
    %17 = vector.broadcast %16 : vector<1x768xf32> to vector<36x768xf32>
    %18 = arith.addf %15, %17 : vector<36x768xf32>
    %cst_16 = arith.constant 0.000000e+00 : f32
    %19 = vector.broadcast %cst_16 : f32 to vector<36x768xf32>
    %20 = arith.maximumf %18, %19 : vector<36x768xf32>
    %cst_17 = arith.constant dense<0.000000e+00> : vector<768xf32>
    %21 = vector.multi_reduction <add>, %20, %cst_17 [0] : vector<36x768xf32> to vector<768xf32>
    %22 = vector.shape_cast %21 : vector<768xf32> to vector<1x768xf32>
    %cst_18 = arith.constant 3.600000e+01 : f32
    %23 = vector.broadcast %cst_18 : f32 to vector<1x768xf32>
    %24 = arith.divf %22, %23 : vector<1x768xf32>
    %c0_19 = arith.constant 0 : index
    %c0_20 = arith.constant 0 : index
    %c0_21 = arith.constant 0 : index
    %25 = vector.load %arg7[%c0_19, %c0_20, %c0_21] : memref<1x1x768xf32, #tpu.memory_space<vmem>>, vector<1x1x768xf32>
    %26 = vector.shape_cast %25 : vector<1x1x768xf32> to vector<1x768xf32>
    %27 = vector.shape_cast %24 : vector<1x768xf32> to vector<1x1x768xf32>
    tpu.vector_store %arg7[%c0_19, %c0_20, %c0_21], %27 {strides = array<i32>} : memref<1x1x768xf32, #tpu.memory_space<vmem>>, vector<1x1x768xf32>,
    return
  }
  func.func @transform_0(%arg0: i32) -> (i32, i32, i32) {
    %c0_i32 = arith.constant 0 : i32
    %c0_i32_0 = arith.constant 0 : i32
    %c0_i32_1 = arith.constant 0 : i32
    return %arg0, %c0_i32, %c0_i32_0 : i32, i32, i32
  }
  func.func @transform_1(%arg0: i32) -> (i32, i32) {
    %c0_i32 = arith.constant 0 : i32
    %c0_i32_0 = arith.constant 0 : i32
    %c0_i32_1 = arith.constant 0 : i32
    return %c0_i32, %c0_i32_0 : i32, i32
  }
  func.func @transform_2(%arg0: i32) -> (i32, i32) {
    %c0_i32 = arith.constant 0 : i32
    %c0_i32_0 = arith.constant 0 : i32
    %c0_i32_1 = arith.constant 0 : i32
    return %c0_i32, %c0_i32_0 : i32, i32
  }
  func.func @transform_3(%arg0: i32) -> (i32, i32) {
    %c0_i32 = arith.constant 0 : i32
    %c0_i32_0 = arith.constant 0 : i32
    %c0_i32_1 = arith.constant 0 : i32
    return %c0_i32, %c0_i32_0 : i32, i32
  }
  func.func @transform_4(%arg0: i32) -> (i32, i32) {
    %c0_i32 = arith.constant 0 : i32
    %c0_i32_0 = arith.constant 0 : i32
    %c0_i32_1 = arith.constant 0 : i32
    return %c0_i32, %c0_i32_0 : i32, i32
  }
  func.func @transform_5(%arg0: i32) -> (i32, i32) {
    %c0_i32 = arith.constant 0 : i32
    %c0_i32_0 = arith.constant 0 : i32
    %c0_i32_1 = arith.constant 0 : i32
    return %c0_i32, %c0_i32_0 : i32, i32
  }
  func.func @transform_6(%arg0: i32) -> (i32, i32, i32) {
    %c0_i32 = arith.constant 0 : i32
    %c0_i32_0 = arith.constant 0 : i32
    %c0_i32_1 = arith.constant 0 : i32
    return %arg0, %c0_i32, %c0_i32_0 : i32, i32, i32
  }
}

</mosaic_0001>

<llo_original>
// kernel: tpu_custom_call.1
$region0: #{tpu_custom_call.1}
  #allocation0 [shape = 'u32[]', space=smem, size = 0x4, offset = 0x4, fixed_abs, tag = 'smem constant byte address 0x4 - core index']
  #allocation1 [shape = 'u32[144,128]{1,0:T(1,128)}', space=vmem, size = 0x12000, scoped, tag = 'internal scratch']
  %s0 = inlined_call_operand.hbm [shape: f32[2,4,256], index: 0, kind: input, shape index: {}]
  %s1 = inlined_call_operand.hbm [shape: f32[36,256], index: 1, kind: input, shape index: {}]
  %s2 = inlined_call_operand.vmem [shape: f32[4,128], index: 2, kind: input, shape index: {}]
  %s3 = inlined_call_operand.vmem [shape: f32[1,128], index: 3, kind: input, shape index: {}]
  %s4 = inlined_call_operand.hbm [shape: f32[128,768], index: 4, kind: input, shape index: {}]
  %s5 = inlined_call_operand.vmem [shape: f32[1,768], index: 5, kind: input, shape index: {}]
  %s6 = inlined_call_operand.hbm [shape: f32[2,1,768], index: 6, kind: output, shape index: {}]
  %s7 = sld [smem:[#allocation0]]
  $region69: #{tpu_custom_call.1} parent=0
    _
  %s9 = ssub.s32 1, %s7
  %s10 = scalar_select 0, %s9, %s7
  $region1: #{tpu_custom_call.1} parent=0
    #allocation2 [shape = 'u8[8192]{0}', space=vmem, size = 0x2000, scoped, tag = 'input window, operand 0']
    #allocation3 [shape = 's32[2]{0}', space=sflag, size = 0x8, scoped, tag = 'scoped memory for tpu_custom_call.1']
    #allocation4 [shape = 's32[2]{0}', space=sflag, size = 0x8, scoped, tag = 'scoped memory for tpu_custom_call.1']
    #allocation5 [shape = 'u8[40960]{0}', space=vmem, size = 0xa000, scoped, tag = 'input window, operand 1, single buffered']
    #allocation6 [shape = 's32[1]{0}', space=sflag, size = 0x4, scoped, tag = 'scoped memory for tpu_custom_call.1']
    #allocation7 [shape = 'u8[393216]{0}', space=vmem, size = 0x60000, scoped, tag = 'input window, operand 4, single buffered']
    #allocation8 [shape = 'u8[6144]{0}', space=vmem, size = 0x1800, scoped, tag = 'output window, operand 0']
    %11 = vsyncpa [#allocation3], 0
    %s12 = scalar_lea.sflag [#allocation3], 1
    %13 = vsyncpa %s12, 0
    %14 = vsyncpa [#allocation6], 0
    %15 = vsyncpa [#allocation4], 0
    %s16 = scalar_lea.sflag [#allocation4], 1
    %17 = vsyncpa %s16, 0
    loop: start=0, step=1, limit=4
    $region2: #{tpu_custom_call.1} parent=1 // loop_pre_header
      _
    $region3: #{tpu_custom_call.1} parent=1 // loop_header
      %s19 = sphi 0, %s23
      %p20 = scmp.ge.s32.totalorder %s19, 4
      %s29 = sphi 0, %s31
      %s32 = sphi 0, %s29
      %s33 = sphi 0, %s32
      %s49 = sphi 0, %s33
      %s53 = sphi 0, %s53
      %s55 = sphi 0, %s53
      %s56 = sphi 0, %s55
      %s70 = sphi 0, %s56
      %s74 = sphi 0, %s74
      %s76 = sphi 0, %s74
      %s77 = sphi 0, %s76
      %s91 = sphi 0, %s77
      %s95 = sphi 0, %s95
      %s97 = sphi 0, %s95
      %s98 = sphi 0, %s97
      %s112 = sphi 0, %s98
      %s116 = sphi 0, %s116
      %s118 = sphi 0, %s116
      %s119 = sphi 0, %s118
      %s133 = sphi 0, %s119
      %s137 = sphi 0, %s137
      %s139 = sphi 0, %s137
      %s140 = sphi 0, %s139
      %s154 = sphi 0, %s140
      %s160 = sphi 0, %s162
      %s163 = sphi 0, %s160
      %s164 = sphi 0, %s163
      %s180 = sphi 0, %s164
    $region4: #{tpu_custom_call.1} parent=1 // loop_header_branch
      %22 = sbr.rel (%p20) target = $region8
    $region5: #{tpu_custom_call.1} parent=1 // loop_body
      %s24 = ssub.s32 %s19, 1
      %s25 = ssub.s32 %s19, 2
      %s26 = sadd.s32 %s19, 1
      %s27 = ssub.s32 %s19, %s26
      %p28 = scmp.eq.s32.totalorder %s27, 0
      %s30 = sadd.s32 %s29, 1
      %s31 = scalar_select %p28, %s29, %s30
      %p34 = pneg %p28
      %p35 = scmp.eq.s32.totalorder %s19, 1
      %p36 = por %p34, %p35
      %p37 = scmp.ne.s32.totalorder %s29, %s32
      %p38 = scmp.eq.s32.totalorder %s19, 0
      %p39 = por %p37, %p38
      %p40 = scmp.ne.s32.totalorder %s29, %s32
      %p41 = scmp.eq.s32.totalorder %s24, 1
      %p42 = por %p40, %p41
      %p43 = scmp.ne.s32.totalorder %s32, %s33
      %p44 = scmp.eq.s32.totalorder %s24, 0
      %p45 = por %p43, %p44
      %p46 = scmp.ne.s32.totalorder %s32, %s33
      %p47 = scmp.eq.s32.totalorder %s25, 1
      %p48 = por %p46, %p47
      %p50 = scmp.ne.s32.totalorder %s33, %s49
      %p51 = scmp.eq.s32.totalorder %s25, 0
      %p52 = por %p50, %p51
      %s54 = sadd.s32 %s53, 1
      %p57 = scmp.eq.s32.totalorder %s19, 1
      %p58 = scmp.ne.s32.totalorder %s53, %s55
      %p59 = scmp.eq.s32.totalorder %s19, 0
      %p60 = por %p58, %p59
      %p61 = scmp.ne.s32.totalorder %s53, %s55
      %p62 = scmp.eq.s32.totalorder %s24, 1
      %p63 = por %p61, %p62
      %p64 = scmp.ne.s32.totalorder %s55, %s56
      %p65 = scmp.eq.s32.totalorder %s24, 0
      %p66 = por %p64, %p65
      %p67 = scmp.ne.s32.totalorder %s55, %s56
      %p68 = scmp.eq.s32.totalorder %s25, 1
      %p69 = por %p67, %p68
      %p71 = scmp.ne.s32.totalorder %s56, %s70
      %p72 = scmp.eq.s32.totalorder %s25, 0
      %p73 = por %p71, %p72
      %s75 = sadd.s32 %s74, 1
      %p78 = scmp.eq.s32.totalorder %s19, 1
      %p79 = scmp.ne.s32.totalorder %s74, %s76
      %p80 = scmp.eq.s32.totalorder %s19, 0
      %p81 = por %p79, %p80
      %p82 = scmp.ne.s32.totalorder %s74, %s76
      %p83 = scmp.eq.s32.totalorder %s24, 1
      %p84 = por %p82, %p83
      %p85 = scmp.ne.s32.totalorder %s76, %s77
      %p86 = scmp.eq.s32.totalorder %s24, 0
      %p87 = por %p85, %p86
      %p88 = scmp.ne.s32.totalorder %s76, %s77
      %p89 = scmp.eq.s32.totalorder %s25, 1
      %p90 = por %p88, %p89
      %p92 = scmp.ne.s32.totalorder %s77, %s91
      %p93 = scmp.eq.s32.totalorder %s25, 0
      %p94 = por %p92, %p93
      %s96 = sadd.s32 %s95, 1
      %p99 = scmp.eq.s32.totalorder %s19, 1
      %p100 = scmp.ne.s32.totalorder %s95, %s97
      %p101 = scmp.eq.s32.totalorder %s19, 0
      %p102 = por %p100, %p101
      %p103 = scmp.ne.s32.totalorder %s95, %s97
      %p104 = scmp.eq.s32.totalorder %s24, 1
      %p105 = por %p103, %p104
      %p106 = scmp.ne.s32.totalorder %s97, %s98
      %p107 = scmp.eq.s32.totalorder %s24, 0
      %p108 = por %p106, %p107
      %p109 = scmp.ne.s32.totalorder %s97, %s98
      %p110 = scmp.eq.s32.totalorder %s25, 1
      %p111 = por %p109, %p110
      %p113 = scmp.ne.s32.totalorder %s98, %s112
      %p114 = scmp.eq.s32.totalorder %s25, 0
      %p115 = por %p113, %p114
      %s117 = sadd.s32 %s116, 1
      %p120 = scmp.eq.s32.totalorder %s19, 1
      %p121 = scmp.ne.s32.totalorder %s116, %s118
      %p122 = scmp.eq.s32.totalorder %s19, 0
      %p123 = por %p121, %p122
      %p124 = scmp.ne.s32.totalorder %s116, %s118
      %p125 = scmp.eq.s32.totalorder %s24, 1
      %p126 = por %p124, %p125
      %p127 = scmp.ne.s32.totalorder %s118, %s119
      %p128 = scmp.eq.s32.totalorder %s24, 0
      %p129 = por %p127, %p128
      %p130 = scmp.ne.s32.totalorder %s118, %s119
      %p131 = scmp.eq.s32.totalorder %s25, 1
      %p132 = por %p130, %p131
      %p134 = scmp.ne.s32.totalorder %s119, %s133
      %p135 = scmp.eq.s32.totalorder %s25, 0
      %p136 = por %p134, %p135
      %s138 = sadd.s32 %s137, 1
      %p141 = scmp.eq.s32.totalorder %s19, 1
      %p142 = scmp.ne.s32.totalorder %s137, %s139
      %p143 = scmp.eq.s32.totalorder %s19, 0
      %p144 = por %p142, %p143
      %p145 = scmp.ne.s32.totalorder %s137, %s139
      %p146 = scmp.eq.s32.totalorder %s24, 1
      %p147 = por %p145, %p146
      %p148 = scmp.ne.s32.totalorder %s139, %s140
      %p149 = scmp.eq.s32.totalorder %s24, 0
      %p150 = por %p148, %p149
      %p151 = scmp.ne.s32.totalorder %s139, %s140
      %p152 = scmp.eq.s32.totalorder %s25, 1
      %p153 = por %p151, %p152
      %p155 = scmp.ne.s32.totalorder %s140, %s154
      %p156 = scmp.eq.s32.totalorder %s25, 0
      %p157 = por %p155, %p156
      %s158 = ssub.s32 %s19, %s26
      %p159 = scmp.eq.s32.totalorder %s158, 0
      %s161 = sadd.s32 %s160, 1
      %s162 = scalar_select %p159, %s160, %s161
      %p165 = pneg %p159
      %p166 = scmp.eq.s32.totalorder %s19, 1
      %p167 = por %p165, %p166
      %p168 = scmp.ne.s32.totalorder %s160, %s163
      %p169 = scmp.eq.s32.totalorder %s19, 0
      %p170 = por %p168, %p169
      %p171 = scmp.ne.s32.totalorder %s160, %s163
      %p172 = scmp.eq.s32.totalorder %s24, 1
      %p173 = por %p171, %p172
      %p174 = scmp.ne.s32.totalorder %s163, %s164
      %p175 = scmp.eq.s32.totalorder %s24, 0
      %p176 = por %p174, %p175
      %p177 = scmp.ne.s32.totalorder %s163, %s164
      %p178 = scmp.eq.s32.totalorder %s25, 1
      %p179 = por %p177, %p178
      %p181 = scmp.ne.s32.totalorder %s164, %s180
      %p182 = scmp.eq.s32.totalorder %s25, 0
      %p183 = por %p181, %p182
      %p184 = scmp.le.s32.totalorder 1, %s19
      %p185 = scmp.lt.s32.totalorder %s19, 3
      %p186 = pnand %p184, %p185
      %p187 = pneg %p186
      // Predicated region
      $region9: #{tpu_custom_call.1} parent=5 // pred_check
        _
      $region10: #{tpu_custom_call.1} parent=5 // pred_check_branch
        %189 = sbr.rel (%p186) target = $region12
      $region11: #{tpu_custom_call.1} parent=5 // pred_region
        %s190 = ssub.s32 %s19, 1
        // Predicated region
        $region13: #{tpu_custom_call.1} parent=11 // pred_check
          %p191 = pneg %p66
        $region14: #{tpu_custom_call.1} parent=11 // pred_check_branch
          %193 = sbr.rel (%p191) target = $region16
        $region15: #{tpu_custom_call.1} parent=11 // pred_region
          %s195 = ssub.s32 1280, 1280
          %196 = vsyncadd [#allocation6], %s195
          %s197 = sshll.u32 [#allocation5], 4
          %s198 = int_to_ptr.vmem [resolvable:$true] %s197
          %203 = dma.hbm_to_vmem [thread:$0]  %s1, 1280, %s198, [#allocation6], 256, 256, 16
        $region16: #{tpu_custom_call.1} parent=11 // pred_fallthru
          _
        // Predicated region
        $region17: #{tpu_custom_call.1} parent=11 // pred_check
          %p204 = pneg %p87
        $region18: #{tpu_custom_call.1} parent=11 // pred_check_branch
          %206 = sbr.rel (%p204) target = $region20
        $region19: #{tpu_custom_call.1} parent=11 // pred_region
          _
        $region20: #{tpu_custom_call.1} parent=11 // pred_fallthru
          _
        // Predicated region
        $region21: #{tpu_custom_call.1} parent=11 // pred_check
          %p207 = pneg %p108
        $region22: #{tpu_custom_call.1} parent=11 // pred_check_branch
          %209 = sbr.rel (%p207) target = $region24
        $region23: #{tpu_custom_call.1} parent=11 // pred_region
          _
        $region24: #{tpu_custom_call.1} parent=11 // pred_fallthru
          _
        // Predicated region
        $region25: #{tpu_custom_call.1} parent=11 // pred_check
          %p210 = pneg %p129
        $region26: #{tpu_custom_call.1} parent=11 // pred_check_branch
          %212 = sbr.rel (%p210) target = $region28
        $region27: #{tpu_custom_call.1} parent=11 // pred_region
          %s214 = ssub.s32 12288, 12288
          %215 = vsyncadd [#allocation6], %s214
          %s216 = sshll.u32 [#allocation7], 4
          %s217 = int_to_ptr.vmem [resolvable:$true] %s216
          %222 = dma.hbm_to_vmem [thread:$0]  %s4, 12288, %s217, [#allocation6], 768, 768, 48
        $region28: #{tpu_custom_call.1} parent=11 // pred_fallthru
          _
        // Predicated region
        $region29: #{tpu_custom_call.1} parent=11 // pred_check
          %p223 = pneg %p150
        $region30: #{tpu_custom_call.1} parent=11 // pred_check_branch
          %225 = sbr.rel (%p223) target = $region32
        $region31: #{tpu_custom_call.1} parent=11 // pred_region
          _
        $region32: #{tpu_custom_call.1} parent=11 // pred_fallthru
          _
      $region12: #{tpu_custom_call.1} parent=5 // pred_fallthru
        _
      %p226 = scmp.lt.s32.totalorder %s19, 2
      // Predicated region
      $region33: #{tpu_custom_call.1} parent=5 // pred_check
        %p227 = pneg %p226
      $region34: #{tpu_custom_call.1} parent=5 // pred_check_branch
        %229 = sbr.rel (%p227) target = $region36
      $region35: #{tpu_custom_call.1} parent=5 // pred_region
        // Predicated region
        $region37: #{tpu_custom_call.1} parent=35 // pred_check
          %p230 = pneg %p39
        $region38: #{tpu_custom_call.1} parent=35 // pred_check_branch
          %232 = sbr.rel (%p230) target = $region40
        $region39: #{tpu_custom_call.1} parent=35 // pred_region
          %s233 = sand.u32 %s29, 1
          %s234 = scalar_lea.sflag [#allocation3], %s233
          %s235 = sand.u32 %s29, 1
          %s236 = smul.addr %s235, 8
          %s237 = scalar_lea.vmem [#allocation2], %s236
          %s239 = ssub.s32 128, 128
          %240 = vsyncadd %s234, %s239
          %s241 = smul.addr %s19, 2
          %s242 = smul.addr %s241, 64
          %s243 = scalar_lea.hbm %s0, %s242
          %s245 = sshll.u32 %s237, 4
          %s246 = int_to_ptr.vmem [resolvable:$true] %s245
          %248 = dma.hbm_to_vmem [thread:$0]  %s243, 128, %s246, %s234
        $region40: #{tpu_custom_call.1} parent=35 // pred_fallthru
          _
      $region36: #{tpu_custom_call.1} parent=5 // pred_fallthru
        _
      %p249 = scmp.le.s32.totalorder 1, %s19
      %p250 = scmp.lt.s32.totalorder %s19, 3
      %p251 = pnand %p249, %p250
      %p252 = pneg %p251
      // Predicated region
      $region41: #{tpu_custom_call.1} parent=5 // pred_check
        _
      $region42: #{tpu_custom_call.1} parent=5 // pred_check_branch
        %254 = sbr.rel (%p251) target = $region44
      $region43: #{tpu_custom_call.1} parent=5 // pred_region
        %s255 = ssub.s32 %s19, 1
        %s256 = sand.u32 %s32, 1
        %s257 = scalar_lea.sflag [#allocation3], %s256
        %s258 = sand.u32 %s32, 1
        %s259 = smul.addr %s258, 8
        %s260 = scalar_lea.vmem [#allocation2], %s259
        // Predicated region
        $region45: #{tpu_custom_call.1} parent=43 // pred_check
          %p261 = pneg %p45
        $region46: #{tpu_custom_call.1} parent=43 // pred_check_branch
          %263 = sbr.rel (%p261) target = $region48
        $region47: #{tpu_custom_call.1} parent=43 // pred_region
          %264 = dma.done %s257, 128
        $region48: #{tpu_custom_call.1} parent=43 // pred_fallthru
          _
        // Predicated region
        $region49: #{tpu_custom_call.1} parent=43 // pred_check
          %p265 = pneg %p66
        $region50: #{tpu_custom_call.1} parent=43 // pred_check_branch
          %267 = sbr.rel (%p265) target = $region52
        $region51: #{tpu_custom_call.1} parent=43 // pred_region
          %268 = dma.done [#allocation6], 1280
        $region52: #{tpu_custom_call.1} parent=43 // pred_fallthru
          _
        // Predicated region
        $region53: #{tpu_custom_call.1} parent=43 // pred_check
          %p269 = pneg %p129
        $region54: #{tpu_custom_call.1} parent=43 // pred_check_branch
          %271 = sbr.rel (%p269) target = $region56
        $region55: #{tpu_custom_call.1} parent=43 // pred_region
          %272 = dma.done [#allocation6], 12288
        $region56: #{tpu_custom_call.1} parent=43 // pred_fallthru
          _
        %s273 = sand.u32 %s32, 1
        %s274 = scalar_lea.sflag [#allocation3], %s273
        %s275 = sand.u32 %s32, 1
        %s276 = smul.addr %s275, 8
        %s277 = scalar_lea.vmem [#allocation2], %s276
        %p278 = pneg %p45
        %p279 = pneg %p42
        %p280 = pneg %p66
        %p281 = pneg %p63
        %p282 = pneg %p87
        %p283 = pneg %p84
        %p284 = pneg %p108
        %p285 = pneg %p105
        %p286 = pneg %p129
        %p287 = pneg %p126
        %p288 = pneg %p150
        %p289 = pneg %p147
        %p290 = pneg %p176
        %p291 = pneg %p173
        %s292 = sand.u32 %s163, 1
        %s293 = scalar_lea.sflag [#allocation4], %s292
        %s294 = sand.u32 %s163, 1
        %s295 = smul.addr %s294, 6
        %s296 = scalar_lea.vmem [#allocation8], %s295
        %v297 = vld [vmem:[%s260] sm:$0xff]
        %v298 = vmax.f32 %v297, 0.0
        %v300 = vcombine.high %v298, %v298
        %302 = vxpose.xlu0.b32.start [1/16] %v298, 128
        %303 = vxpose.xlu0.b32.cont [2/16] 0.0, 128
        %304 = vxpose.xlu0.b32.cont [3/16] 0.0, 128
        %305 = vxpose.xlu0.b32.cont [4/16] 0.0, 128
        %306 = vxpose.xlu0.b32.cont [5/16] 0.0, 128
        %307 = vxpose.xlu0.b32.cont [6/16] 0.0, 128
        %308 = vxpose.xlu0.b32.cont [7/16] 0.0, 128
        %309 = vxpose.xlu0.b32.cont [8/16] 0.0, 128
        %310 = vxpose.xlu0.b32.cont [9/16] 0.0, 128
        %311 = vxpose.xlu0.b32.cont [10/16] 0.0, 128
        %312 = vxpose.xlu0.b32.cont [11/16] 0.0, 128
        %313 = vxpose.xlu0.b32.cont [12/16] 0.0, 128
        %314 = vxpose.xlu0.b32.cont [13/16] 0.0, 128
        %315 = vxpose.xlu0.b32.cont [14/16] 0.0, 128
        %316 = vxpose.xlu0.b32.cont [15/16] 0.0, 128
        %317 = vxpose.xlu0.b32.end [16/16] 0.0, 128
        %v318 = vpop.trf.xlu0
        %v319 = vpop.trf.xlu0
        %v320 = vpop.trf.xlu0
        %v321 = vpop.trf.xlu0
        %v322 = vpop.trf.xlu0
        %v323 = vpop.trf.xlu0
        %v324 = vpop.trf.xlu0
        %v325 = vpop.trf.xlu0
        %v326 = vpop.trf.xlu0
        %v327 = vpop.trf.xlu0
        %v328 = vpop.trf.xlu0
        %v329 = vpop.trf.xlu0
        %v330 = vpop.trf.xlu0
        %v331 = vpop.trf.xlu0
        %v332 = vpop.trf.xlu0
        %v333 = vpop.trf.xlu0
        %334 = vxpose.xlu0.b32.start [1/16] %v300, 128
        %335 = vxpose.xlu0.b32.cont [2/16] 0.0, 128
        %336 = vxpose.xlu0.b32.cont [3/16] 0.0, 128
        %337 = vxpose.xlu0.b32.cont [4/16] 0.0, 128
        %338 = vxpose.xlu0.b32.cont [5/16] 0.0, 128
        %339 = vxpose.xlu0.b32.cont [6/16] 0.0, 128
        %340 = vxpose.xlu0.b32.cont [7/16] 0.0, 128
        %341 = vxpose.xlu0.b32.cont [8/16] 0.0, 128
        %342 = vxpose.xlu0.b32.cont [9/16] 0.0, 128
        %343 = vxpose.xlu0.b32.cont [10/16] 0.0, 128
        %344 = vxpose.xlu0.b32.cont [11/16] 0.0, 128
        %345 = vxpose.xlu0.b32.cont [12/16] 0.0, 128
        %346 = vxpose.xlu0.b32.cont [13/16] 0.0, 128
        %347 = vxpose.xlu0.b32.cont [14/16] 0.0, 128
        %348 = vxpose.xlu0.b32.cont [15/16] 0.0, 128
        %349 = vxpose.xlu0.b32.end [16/16] 0.0, 128
        %v350 = vpop.trf.xlu0
        %v351 = vpop.trf.xlu0
        %v352 = vpop.trf.xlu0
        %v353 = vpop.trf.xlu0
        %v354 = vpop.trf.xlu0
        %v355 = vpop.trf.xlu0
        %v356 = vpop.trf.xlu0
        %v357 = vpop.trf.xlu0
        %v358 = vpop.trf.xlu0
        %v359 = vpop.trf.xlu0
        %v360 = vpop.trf.xlu0
        %v361 = vpop.trf.xlu0
        %v362 = vpop.trf.xlu0
        %v363 = vpop.trf.xlu0
        %v364 = vpop.trf.xlu0
        %v365 = vpop.trf.xlu0
        %v366 = vld [vmem:[%s2] sm:$0xf]
        %vm367 = vcmask 31744
        %v369 = vsel %vm367, %v318, 0
        %v372 = vsel %vm367, %v319, 0
        %v375 = vsel %vm367, %v320, 0
        %v378 = vsel %vm367, %v321, 0
        %v381 = vsel %vm367, %v322, 0
        %v384 = vsel %vm367, %v323, 0
        %v387 = vsel %vm367, %v324, 0
        %v390 = vsel %vm367, %v325, 0
        %v393 = vsel %vm367, %v326, 0
        %v396 = vsel %vm367, %v327, 0
        %v399 = vsel %vm367, %v328, 0
        %v402 = vsel %vm367, %v329, 0
        %v405 = vsel %vm367, %v330, 0
        %v408 = vsel %vm367, %v331, 0
        %v411 = vsel %vm367, %v332, 0
        %v414 = vsel %vm367, %v333, 0
        %v417 = vsel %vm367, %v350, 0
        %v420 = vsel %vm367, %v351, 0
        %v423 = vsel %vm367, %v352, 0
        %v426 = vsel %vm367, %v353, 0
        %v429 = vsel %vm367, %v354, 0
        %v432 = vsel %vm367, %v355, 0
        %v435 = vsel %vm367, %v356, 0
        %v438 = vsel %vm367, %v357, 0
        %v441 = vsel %vm367, %v358, 0
        %v444 = vsel %vm367, %v359, 0
        %v447 = vsel %vm367, %v360, 0
        %v450 = vsel %vm367, %v361, 0
        %v453 = vsel %vm367, %v362, 0
        %v456 = vsel %vm367, %v363, 0
        %v459 = vsel %vm367, %v364, 0
        %v462 = vsel %vm367, %v365, 0
        %vm464 = vcmask 1043456
        %v466 = vsel %vm464, %v366, 0
        %468 = vmatprep.subr.mxu0 0.0
        %469 = vmatpush1.msra.mxu0 %v466
        %470 = vmatprep.subr.mxu0 0.0
        %471 = vmatpush1.msra.mxu0 0.0
        %472 = vmatprep.subr.mxu0 0.0
        %473 = vmatpush1.msra.mxu0 0.0
        %474 = vmatprep.subr.mxu0 0.0
        %475 = vmatpush1.msra.mxu0 0.0
        %476 = vmatprep.subr.mxu0 0.0
        %477 = vmatpush1.msra.mxu0 0.0
        %478 = vmatprep.subr.mxu0 0.0
        %479 = vmatpush1.msra.mxu0 0.0
        %480 = vmatprep.subr.mxu0 0.0
        %481 = vmatpush1.msra.mxu0 0.0
        %482 = vmatprep.subr.mxu0 0.0
        %483 = vmatpush1.msra.mxu0 0.0
        %484 = vmatprep.subr.mxu0 0.0
        %485 = vmatpush1.msra.mxu0 0.0
        %486 = vmatprep.subr.mxu0 0.0
        %487 = vmatpush1.msra.mxu0 0.0
        %488 = vmatprep.subr.mxu0 0.0
        %489 = vmatpush1.msra.mxu0 0.0
        %490 = vmatprep.subr.mxu0 0.0
        %491 = vmatpush1.msra.mxu0 0.0
        %492 = vmatprep.subr.mxu0 0.0
        %493 = vmatpush1.msra.mxu0 0.0
        %494 = vmatprep.subr.mxu0 0.0
        %495 = vmatpush1.msra.mxu0 0.0
        %496 = vmatprep.subr.mxu0 0.0
        %497 = vmatpush1.msra.mxu0 0.0
        %498 = vmatprep.subr.mxu0 0.0
        %499 = vmatpush1.msra.mxu0 0.0
        %500 = vmatprep.subr.mxu0 0.0
        %501 = vmatpush1.msra.mxu0 0.0
        %502 = vmatprep.subr.mxu0 0.0
        %503 = vmatpush1.msra.mxu0 0.0
        %504 = vmatprep.subr.mxu0 0.0
        %505 = vmatpush1.msra.mxu0 0.0
        %506 = vmatprep.subr.mxu0 0.0
        %507 = vmatpush1.msra.mxu0 0.0
        %508 = vmatprep.subr.mxu0 0.0
        %509 = vmatpush1.msra.mxu0 0.0
        %510 = vmatprep.subr.mxu0 0.0
        %511 = vmatpush1.msra.mxu0 0.0
        %512 = vmatprep.subr.mxu0 0.0
        %513 = vmatpush1.msra.mxu0 0.0
        %514 = vmatprep.subr.mxu0 0.0
        %515 = vmatpush1.msra.mxu0 0.0
        %516 = vmatprep.subr.mxu0 0.0
        %517 = vmatpush1.msra.mxu0 0.0
        %518 = vmatprep.subr.mxu0 0.0
        %519 = vmatpush1.msra.mxu0 0.0
        %520 = vmatprep.subr.mxu0 0.0
        %521 = vmatpush1.msra.mxu0 0.0
        %522 = vmatprep.subr.mxu0 0.0
        %523 = vmatpush1.msra.mxu0 0.0
        %524 = vmatprep.subr.mxu0 0.0
        %525 = vmatpush1.msra.mxu0 0.0
        %526 = vmatprep.subr.mxu0 0.0
        %527 = vmatpush1.msra.mxu0 0.0
        %528 = vmatprep.subr.mxu0 0.0
        %529 = vmatpush1.msra.mxu0 0.0
        %530 = vmatprep.subr.mxu0 0.0
        %531 = vmatpush1.msra.mxu0 0.0
        %532 = vmatprep.mubr.f32.mxu0 0.0
        %533 = vmatmul.mubr.f32.gmra.mrb[0].mxu0 %v369
        %v534 = vpop.f32.mrb[0].mxu0
        %v535 = vadd.f32 0.0, %v534
        %v536 = vpop.f32.mrb[0].mxu0
        %537 = vmatprep.mubr.f32.mxu0 0.0
        %538 = vmatmul.mubr.f32.gmra.mrb[0].mxu0 %v372
        %v539 = vpop.f32.mrb[0].mxu0
        %v540 = vadd.f32 0.0, %v539
        %v541 = vpop.f32.mrb[0].mxu0
        %542 = vmatprep.mubr.f32.mxu0 0.0
        %543 = vmatmul.mubr.f32.gmra.mrb[0].mxu0 %v375
        %v544 = vpop.f32.mrb[0].mxu0
        %v545 = vadd.f32 0.0, %v544
        %v546 = vpop.f32.mrb[0].mxu0
        %547 = vmatprep.mubr.f32.mxu0 0.0
        %548 = vmatmul.mubr.f32.gmra.mrb[0].mxu0 %v378
        %v549 = vpop.f32.mrb[0].mxu0
        %v550 = vadd.f32 0.0, %v549
        %v551 = vpop.f32.mrb[0].mxu0
        %552 = vmatprep.mubr.f32.mxu0 0.0
        %553 = vmatmul.mubr.f32.gmra.mrb[0].mxu0 %v381
        %v554 = vpop.f32.mrb[0].mxu0
        %v555 = vadd.f32 0.0, %v554
        %v556 = vpop.f32.mrb[0].mxu0
        %557 = vmatprep.mubr.f32.mxu0 0.0
        %558 = vmatmul.mubr.f32.gmra.mrb[0].mxu0 %v384
        %v559 = vpop.f32.mrb[0].mxu0
        %v560 = vadd.f32 0.0, %v559
        %v561 = vpop.f32.mrb[0].mxu0
        %562 = vmatprep.mubr.f32.mxu0 0.0
        %563 = vmatmul.mubr.f32.gmra.mrb[0].mxu0 %v387
        %v564 = vpop.f32.mrb[0].mxu0
        %v565 = vadd.f32 0.0, %v564
        %v566 = vpop.f32.mrb[0].mxu0
        %567 = vmatprep.mubr.f32.mxu0 0.0
        %568 = vmatmul.mubr.f32.gmra.mrb[0].mxu0 %v390
        %v569 = vpop.f32.mrb[0].mxu0
        %v570 = vadd.f32 0.0, %v569
        %v571 = vpop.f32.mrb[0].mxu0
        %572 = vmatprep.mubr.f32.mxu0 0.0
        %573 = vmatmul.mubr.f32.gmra.mrb[0].mxu0 %v393
        %v574 = vpop.f32.mrb[0].mxu0
        %v575 = vadd.f32 0.0, %v574
        %v576 = vpop.f32.mrb[0].mxu0
        %577 = vmatprep.mubr.f32.mxu0 0.0
        %578 = vmatmul.mubr.f32.gmra.mrb[0].mxu0 %v396
        %v579 = vpop.f32.mrb[0].mxu0
        %v580 = vadd.f32 0.0, %v579
        %v581 = vpop.f32.mrb[0].mxu0
        %582 = vmatprep.mubr.f32.mxu0 0.0
        %583 = vmatmul.mubr.f32.gmra.mrb[0].mxu0 %v399
        %v584 = vpop.f32.mrb[0].mxu0
        %v585 = vadd.f32 0.0, %v584
        %v586 = vpop.f32.mrb[0].mxu0
        %587 = vmatprep.mubr.f32.mxu0 0.0
        %588 = vmatmul.mubr.f32.gmra.mrb[0].mxu0 %v402
        %v589 = vpop.f32.mrb[0].mxu0
        %v590 = vadd.f32 0.0, %v589
        %v591 = vpop.f32.mrb[0].mxu0
        %592 = vmatprep.mubr.f32.mxu0 0.0
        %593 = vmatmul.mubr.f32.gmra.mrb[0].mxu0 %v405
        %v594 = vpop.f32.mrb[0].mxu0
        %v595 = vadd.f32 0.0, %v594
        %v596 = vpop.f32.mrb[0].mxu0
        %597 = vmatprep.mubr.f32.mxu0 0.0
        %598 = vmatmul.mubr.f32.gmra.mrb[0].mxu0 %v408
        %v599 = vpop.f32.mrb[0].mxu0
        %v600 = vadd.f32 0.0, %v599
        %v601 = vpop.f32.mrb[0].mxu0
        %602 = vmatprep.mubr.f32.mxu0 0.0
        %603 = vmatmul.mubr.f32.gmra.mrb[0].mxu0 %v411
        %v604 = vpop.f32.mrb[0].mxu0
        %v605 = vadd.f32 0.0, %v604
        %v606 = vpop.f32.mrb[0].mxu0
        %607 = vmatprep.mubr.f32.mxu0 0.0
        %608 = vmatmul.mubr.f32.gmra.mrb[0].mxu0 %v414
        %v609 = vpop.f32.mrb[0].mxu0
        %v610 = vadd.f32 0.0, %v609
        %v611 = vpop.f32.mrb[0].mxu0
        %612 = vmatprep.mubr.f32.mxu0 0.0
        %613 = vmatmul.mubr.f32.gmra.mrb[0].mxu0 %v417
        %v614 = vpop.f32.mrb[0].mxu0
        %v615 = vadd.f32 0.0, %v614
        %v616 = vpop.f32.mrb[0].mxu0
        %617 = vmatprep.mubr.f32.mxu0 0.0
        %618 = vmatmul.mubr.f32.gmra.mrb[0].mxu0 %v420
        %v619 = vpop.f32.mrb[0].mxu0
        %v620 = vadd.f32 0.0, %v619
        %v621 = vpop.f32.mrb[0].mxu0
        %622 = vmatprep.mubr.f32.mxu0 0.0
        %623 = vmatmul.mubr.f32.gmra.mrb[0].mxu0 %v423
        %v624 = vpop.f32.mrb[0].mxu0
        %v625 = vadd.f32 0.0, %v624
        %v626 = vpop.f32.mrb[0].mxu0
        %627 = vmatprep.mubr.f32.mxu0 0.0
        %628 = vmatmul.mubr.f32.gmra.mrb[0].mxu0 %v426
        %v629 = vpop.f32.mrb[0].mxu0
        %v630 = vadd.f32 0.0, %v629
        %v631 = vpop.f32.mrb[0].mxu0
        %632 = vmatprep.mubr.f32.mxu0 0.0
        %633 = vmatmul.mubr.f32.gmra.mrb[0].mxu0 %v429
        %v634 = vpop.f32.mrb[0].mxu0
        %v635 = vadd.f32 0.0, %v634
        %v636 = vpop.f32.mrb[0].mxu0
        %637 = vmatprep.mubr.f32.mxu0 0.0
        %638 = vmatmul.mubr.f32.gmra.mrb[0].mxu0 %v432
        %v639 = vpop.f32.mrb[0].mxu0
        %v640 = vadd.f32 0.0, %v639
        %v641 = vpop.f32.mrb[0].mxu0
        %642 = vmatprep.mubr.f32.mxu0 0.0
        %643 = vmatmul.mubr.f32.gmra.mrb[0].mxu0 %v435
        %v644 = vpop.f32.mrb[0].mxu0
        %v645 = vadd.f32 0.0, %v644
        %v646 = vpop.f32.mrb[0].mxu0
        %647 = vmatprep.mubr.f32.mxu0 0.0
        %648 = vmatmul.mubr.f32.gmra.mrb[0].mxu0 %v438
        %v649 = vpop.f32.mrb[0].mxu0
        %v650 = vadd.f32 0.0, %v649
        %v651 = vpop.f32.mrb[0].mxu0
        %652 = vmatprep.mubr.f32.mxu0 0.0
        %653 = vmatmul.mubr.f32.gmra.mrb[0].mxu0 %v441
        %v654 = vpop.f32.mrb[0].mxu0
        %v655 = vadd.f32 0.0, %v654
        %v656 = vpop.f32.mrb[0].mxu0
        %657 = vmatprep.mubr.f32.mxu0 0.0
        %658 = vmatmul.mubr.f32.gmra.mrb[0].mxu0 %v444
        %v659 = vpop.f32.mrb[0].mxu0
        %v660 = vadd.f32 0.0, %v659
        %v661 = vpop.f32.mrb[0].mxu0
        %662 = vmatprep.mubr.f32.mxu0 0.0
        %663 = vmatmul.mubr.f32.gmra.mrb[0].mxu0 %v447
        %v664 = vpop.f32.mrb[0].mxu0
        %v665 = vadd.f32 0.0, %v664
        %v666 = vpop.f32.mrb[0].mxu0
        %667 = vmatprep.mubr.f32.mxu0 0.0
        %668 = vmatmul.mubr.f32.gmra.mrb[0].mxu0 %v450
        %v669 = vpop.f32.mrb[0].mxu0
        %v670 = vadd.f32 0.0, %v669
        %v671 = vpop.f32.mrb[0].mxu0
        %672 = vmatprep.mubr.f32.mxu0 0.0
        %673 = vmatmul.mubr.f32.gmra.mrb[0].mxu0 %v453
        %v674 = vpop.f32.mrb[0].mxu0
        %v675 = vadd.f32 0.0, %v674
        %v676 = vpop.f32.mrb[0].mxu0
        %677 = vmatprep.mubr.f32.mxu0 0.0
        %678 = vmatmul.mubr.f32.gmra.mrb[0].mxu0 %v456
        %v679 = vpop.f32.mrb[0].mxu0
        %v680 = vadd.f32 0.0, %v679
        %v681 = vpop.f32.mrb[0].mxu0
        %682 = vmatprep.mubr.f32.mxu0 0.0
        %683 = vmatmul.mubr.f32.gmra.mrb[0].mxu0 %v459
        %v684 = vpop.f32.mrb[0].mxu0
        %v685 = vadd.f32 0.0, %v684
        %v686 = vpop.f32.mrb[0].mxu0
        %687 = vmatprep.mubr.f32.mxu0 0.0
        %688 = vmatmul.mubr.f32.gmra.mrb[0].mxu0 %v462
        %v689 = vpop.f32.mrb[0].mxu0
        %v690 = vadd.f32 0.0, %v689
        %v691 = vpop.f32.mrb[0].mxu0
        %692 = vdwg.mxu0
        %v693 = vld [vmem:[#allocation5] sm:$0xff]
        %v694 = vld [vmem:[#allocation5 + $0x8] sm:$0xff]
        %v695 = vld [vmem:[#allocation5 + $0x10] sm:$0xff]
        %v696 = vld [vmem:[#allocation5 + $0x18] sm:$0xff]
        %v697 = vld [vmem:[#allocation5 + $0x20] sm:$0xff]
        %v698 = vld [vmem:[#allocation5 + $0x28] sm:$0xff]
        %v699 = vld [vmem:[#allocation5 + $0x30] sm:$0xff]
        %v700 = vld [vmem:[#allocation5 + $0x38] sm:$0xff]
        %v701 = vld [vmem:[#allocation5 + $0x40] sm:$0xf]
        %v702 = vld [vmem:[#allocation5 + $0x48] sm:$0xf]
        %v703 = vld [vmem:[%s3] sm:$0x1]
        %v705 = vlaneseq
        %v706 = vshrl.u32 %v705, 7
        %v707 = vsub.s32 0, %v706
        %v708 = vrot.slane %v703, %v707
        %710 = vmatprep.subr.mxu0 0.0
        %711 = vmatpush1.msra.mxu0 %v535
        %712 = vmatprep.subr.mxu0 0.0
        %713 = vmatpush1.msra.mxu0 %v540
        %714 = vmatprep.subr.mxu0 0.0
        %715 = vmatpush1.msra.mxu0 %v545
        %716 = vmatprep.subr.mxu0 0.0
        %717 = vmatpush1.msra.mxu0 %v550
        %718 = vmatprep.subr.mxu0 0.0
        %719 = vmatpush1.msra.mxu0 %v555
        %720 = vmatprep.subr.mxu0 0.0
        %721 = vmatpush1.msra.mxu0 %v560
        %722 = vmatprep.subr.mxu0 0.0
        %723 = vmatpush1.msra.mxu0 %v565
        %724 = vmatprep.subr.mxu0 0.0
        %725 = vmatpush1.msra.mxu0 %v570
        %726 = vmatprep.subr.mxu0 0.0
        %727 = vmatpush1.msra.mxu0 %v575
        %728 = vmatprep.subr.mxu0 0.0
        %729 = vmatpush1.msra.mxu0 %v580
        %730 = vmatprep.subr.mxu0 0.0
        %731 = vmatpush1.msra.mxu0 %v585
        %732 = vmatprep.subr.mxu0 0.0
        %733 = vmatpush1.msra.mxu0 %v590
        %734 = vmatprep.subr.mxu0 0.0
        %735 = vmatpush1.msra.mxu0 %v595
        %736 = vmatprep.subr.mxu0 0.0
        %737 = vmatpush1.msra.mxu0 %v600
        %738 = vmatprep.subr.mxu0 0.0
        %739 = vmatpush1.msra.mxu0 %v605
        %740 = vmatprep.subr.mxu0 0.0
        %741 = vmatpush1.msra.mxu0 %v610
        %742 = vmatprep.subr.mxu0 0.0
        %743 = vmatpush1.msra.mxu0 %v615
        %744 = vmatprep.subr.mxu0 0.0
        %745 = vmatpush1.msra.mxu0 %v620
        %746 = vmatprep.subr.mxu0 0.0
        %747 = vmatpush1.msra.mxu0 %v625
        %748 = vmatprep.subr.mxu0 0.0
        %749 = vmatpush1.msra.mxu0 %v630
        %750 = vmatprep.subr.mxu0 0.0
        %751 = vmatpush1.msra.mxu0 %v635
        %752 = vmatprep.subr.mxu0 0.0
        %753 = vmatpush1.msra.mxu0 %v640
        %754 = vmatprep.subr.mxu0 0.0
        %755 = vmatpush1.msra.mxu0 %v645
        %756 = vmatprep.subr.mxu0 0.0
        %757 = vmatpush1.msra.mxu0 %v650
        %758 = vmatprep.subr.mxu0 0.0
        %759 = vmatpush1.msra.mxu0 %v655
        %760 = vmatprep.subr.mxu0 0.0
        %761 = vmatpush1.msra.mxu0 %v660
        %762 = vmatprep.subr.mxu0 0.0
        %763 = vmatpush1.msra.mxu0 %v665
        %764 = vmatprep.subr.mxu0 0.0
        %765 = vmatpush1.msra.mxu0 %v670
        %766 = vmatprep.subr.mxu0 0.0
        %767 = vmatpush1.msra.mxu0 %v675
        %768 = vmatprep.subr.mxu0 0.0
        %769 = vmatpush1.msra.mxu0 %v680
        %770 = vmatprep.subr.mxu0 0.0
        %771 = vmatpush1.msra.mxu0 %v685
        %772 = vmatprep.subr.mxu0 0.0
        %773 = vmatpush1.msra.mxu0 %v690
        %774 = vmatprep.mubr.f32.mxu0 %v694
        %775 = vmatmul.mubr.f32.gmra.mrb[0].mxu0 %v693
        %v776 = vpop.f32.mrb[0].mxu0
        %v777 = vadd.f32 %v708, %v776
        %v778 = vpop.f32.mrb[0].mxu0
        %779 = vmatprep.mubr.f32.mxu0 %v696
        %780 = vmatmul.mubr.f32.gmra.mrb[0].mxu0 %v695
        %v781 = vpop.f32.mrb[0].mxu0
        %v782 = vadd.f32 %v708, %v781
        %v783 = vpop.f32.mrb[0].mxu0
        %784 = vmatprep.mubr.f32.mxu0 %v698
        %785 = vmatmul.mubr.f32.gmra.mrb[0].mxu0 %v697
        %v786 = vpop.f32.mrb[0].mxu0
        %v787 = vadd.f32 %v708, %v786
        %v788 = vpop.f32.mrb[0].mxu0
        %789 = vmatprep.mubr.f32.mxu0 %v700
        %790 = vmatmul.mubr.f32.gmra.mrb[0].mxu0 %v699
        %v791 = vpop.f32.mrb[0].mxu0
        %v792 = vadd.f32 %v708, %v791
        %v793 = vpop.f32.mrb[0].mxu0
        %794 = vmatprep.mubr.f32.mxu0 %v702
        %795 = vmatmul.mubr.f32.gmra.mrb[0].mxu0 %v701
        %v796 = vpop.f32.mrb[0].mxu0
        %v797 = vadd.f32 %v708, %v796
        %v798 = vpop.f32.mrb[0].mxu0
        %799 = vdwg.mxu0
        %v800 = vmax.f32 %v777, 0.0
        %v801 = vmax.f32 %v782, 0.0
        %v802 = vmax.f32 %v787, 0.0
        %v803 = vmax.f32 %v792, 0.0
        %v804 = vmax.f32 %v797, 0.0
        %v805 = vld [vmem:[#allocation7] sm:$0xff]
        %v806 = vld [vmem:[#allocation7 + $0x8] sm:$0xff]
        %v807 = vld [vmem:[#allocation7 + $0x10] sm:$0xff]
        %v808 = vld [vmem:[#allocation7 + $0x18] sm:$0xff]
        %v809 = vld [vmem:[#allocation7 + $0x20] sm:$0xff]
        %v810 = vld [vmem:[#allocation7 + $0x28] sm:$0xff]
        %v811 = vld [vmem:[#allocation7 + $0x30] sm:$0xff]
        %v812 = vld [vmem:[#allocation7 + $0x38] sm:$0xff]
        %v813 = vld [vmem:[#allocation7 + $0x40] sm:$0xff]
        %v814 = vld [vmem:[#allocation7 + $0x48] sm:$0xff]
        %v815 = vld [vmem:[#allocation7 + $0x50] sm:$0xff]
        %v816 = vld [vmem:[#allocation7 + $0x58] sm:$0xff]
        %v817 = vld [vmem:[#allocation7 + $0x60] sm:$0xff]
        %v818 = vld [vmem:[#allocation7 + $0x68] sm:$0xff]
        %v819 = vld [vmem:[#allocation7 + $0x70] sm:$0xff]
        %v820 = vld [vmem:[#allocation7 + $0x78] sm:$0xff]
        %v821 = vld [vmem:[#allocation7 + $0x80] sm:$0xff]
        %v822 = vld [vmem:[#allocation7 + $0x88] sm:$0xff]
        %v823 = vld [vmem:[#allocation7 + $0x90] sm:$0xff]
        %v824 = vld [vmem:[#allocation7 + $0x98] sm:$0xff]
        %v825 = vld [vmem:[#allocation7 + $0xa0] sm:$0xff]
        %v826 = vld [vmem:[#allocation7 + $0xa8] sm:$0xff]
        %v827 = vld [vmem:[#allocation7 + $0xb0] sm:$0xff]
        %v828 = vld [vmem:[#allocation7 + $0xb8] sm:$0xff]
        %v829 = vld [vmem:[#allocation7 + $0xc0] sm:$0xff]
        %v830 = vld [vmem:[#allocation7 + $0xc8] sm:$0xff]
        %v831 = vld [vmem:[#allocation7 + $0xd0] sm:$0xff]
        %v832 = vld [vmem:[#allocation7 + $0xd8] sm:$0xff]
        %v833 = vld [vmem:[#allocation7 + $0xe0] sm:$0xff]
        %v834 = vld [vmem:[#allocation7 + $0xe8] sm:$0xff]
        %v835 = vld [vmem:[#allocation7 + $0xf0] sm:$0xff]
        %v836 = vld [vmem:[#allocation7 + $0xf8] sm:$0xff]
        %v837 = vld [vmem:[#allocation7 + $0x100] sm:$0xff]
        %v838 = vld [vmem:[#allocation7 + $0x108] sm:$0xff]
        %v839 = vld [vmem:[#allocation7 + $0x110] sm:$0xff]
        %v840 = vld [vmem:[#allocation7 + $0x118] sm:$0xff]
        %v841 = vld [vmem:[#allocation7 + $0x120] sm:$0xff]
        %v842 = vld [vmem:[#allocation7 + $0x128] sm:$0xff]
        %v843 = vld [vmem:[#allocation7 + $0x130] sm:$0xff]
        %v844 = vld [vmem:[#allocation7 + $0x138] sm:$0xff]
        %v845 = vld [vmem:[#allocation7 + $0x140] sm:$0xff]
        %v846 = vld [vmem:[#allocation7 + $0x148] sm:$0xff]
        %v847 = vld [vmem:[#allocation7 + $0x150] sm:$0xff]
        %v848 = vld [vmem:[#allocation7 + $0x158] sm:$0xff]
        %v849 = vld [vmem:[#allocation7 + $0x160] sm:$0xff]
        %v850 = vld [vmem:[#allocation7 + $0x168] sm:$0xff]
        %v851 = vld [vmem:[#allocation7 + $0x170] sm:$0xff]
        %v852 = vld [vmem:[#allocation7 + $0x178] sm:$0xff]
        %v853 = vld [vmem:[#allocation7 + $0x180] sm:$0xff]
        %v854 = vld [vmem:[#allocation7 + $0x188] sm:$0xff]
        %v855 = vld [vmem:[#allocation7 + $0x190] sm:$0xff]
        %v856 = vld [vmem:[#allocation7 + $0x198] sm:$0xff]
        %v857 = vld [vmem:[#allocation7 + $0x1a0] sm:$0xff]
        %v858 = vld [vmem:[#allocation7 + $0x1a8] sm:$0xff]
        %v859 = vld [vmem:[#allocation7 + $0x1b0] sm:$0xff]
        %v860 = vld [vmem:[#allocation7 + $0x1b8] sm:$0xff]
        %v861 = vld [vmem:[#allocation7 + $0x1c0] sm:$0xff]
        %v862 = vld [vmem:[#allocation7 + $0x1c8] sm:$0xff]
        %v863 = vld [vmem:[#allocation7 + $0x1d0] sm:$0xff]
        %v864 = vld [vmem:[#allocation7 + $0x1d8] sm:$0xff]
        %v865 = vld [vmem:[#allocation7 + $0x1e0] sm:$0xff]
        %v866 = vld [vmem:[#allocation7 + $0x1e8] sm:$0xff]
        %v867 = vld [vmem:[#allocation7 + $0x1f0] sm:$0xff]
        %v868 = vld [vmem:[#allocation7 + $0x1f8] sm:$0xff]
        %v869 = vld [vmem:[#allocation7 + $0x200] sm:$0xff]
        %v870 = vld [vmem:[#allocation7 + $0x208] sm:$0xff]
        %v871 = vld [vmem:[#allocation7 + $0x210] sm:$0xff]
        %v872 = vld [vmem:[#allocation7 + $0x218] sm:$0xff]
        %v873 = vld [vmem:[#allocation7 + $0x220] sm:$0xff]
        %v874 = vld [vmem:[#allocation7 + $0x228] sm:$0xff]
        %v875 = vld [vmem:[#allocation7 + $0x230] sm:$0xff]
        %v876 = vld [vmem:[#allocation7 + $0x238] sm:$0xff]
        %v877 = vld [vmem:[#allocation7 + $0x240] sm:$0xff]
        %v878 = vld [vmem:[#allocation7 + $0x248] sm:$0xff]
        %v879 = vld [vmem:[#allocation7 + $0x250] sm:$0xff]
        %v880 = vld [vmem:[#allocation7 + $0x258] sm:$0xff]
        %v881 = vld [vmem:[#allocation7 + $0x260] sm:$0xff]
        %v882 = vld [vmem:[#allocation7 + $0x268] sm:$0xff]
        %v883 = vld [vmem:[#allocation7 + $0x270] sm:$0xff]
        %v884 = vld [vmem:[#allocation7 + $0x278] sm:$0xff]
        %v885 = vld [vmem:[#allocation7 + $0x280] sm:$0xff]
        %v886 = vld [vmem:[#allocation7 + $0x288] sm:$0xff]
        %v887 = vld [vmem:[#allocation7 + $0x290] sm:$0xff]
        %v888 = vld [vmem:[#allocation7 + $0x298] sm:$0xff]
        %v889 = vld [vmem:[#allocation7 + $0x2a0] sm:$0xff]
        %v890 = vld [vmem:[#allocation7 + $0x2a8] sm:$0xff]
        %v891 = vld [vmem:[#allocation7 + $0x2b0] sm:$0xff]
        %v892 = vld [vmem:[#allocation7 + $0x2b8] sm:$0xff]
        %v893 = vld [vmem:[#allocation7 + $0x2c0] sm:$0xff]
        %v894 = vld [vmem:[#allocation7 + $0x2c8] sm:$0xff]
        %v895 = vld [vmem:[#allocation7 + $0x2d0] sm:$0xff]
        %v896 = vld [vmem:[#allocation7 + $0x2d8] sm:$0xff]
        %v897 = vld [vmem:[#allocation7 + $0x2e0] sm:$0xff]
        %v898 = vld [vmem:[#allocation7 + $0x2e8] sm:$0xff]
        %v899 = vld [vmem:[#allocation7 + $0x2f0] sm:$0xff]
        %v900 = vld [vmem:[#allocation7 + $0x2f8] sm:$0xff]
        %v901 = vld [vmem:[%s5] sm:$0x3f]
        %v903 = vlaneseq
        %v904 = vshrl.u32 %v903, 7
        %v905 = vsub.s32 0, %v904
        %v906 = vrot.slane %v901, %v905
        %v907 = vlaneseq
        %v908 = vshrl.u32 %v907, 7
        %v909 = vsub.s32 1, %v908
        %v910 = vrot.slane %v901, %v909
        %v911 = vlaneseq
        %v912 = vshrl.u32 %v911, 7
        %v913 = vsub.s32 2, %v912
        %v914 = vrot.slane %v901, %v913
        %v915 = vlaneseq
        %v916 = vshrl.u32 %v915, 7
        %v917 = vsub.s32 3, %v916
        %v918 = vrot.slane %v901, %v917
        %v919 = vlaneseq
        %v920 = vshrl.u32 %v919, 7
        %v921 = vsub.s32 4, %v920
        %v922 = vrot.slane %v901, %v921
        %v923 = vlaneseq
        %v924 = vshrl.u32 %v923, 7
        %v925 = vsub.s32 5, %v924
        %v926 = vrot.slane %v901, %v925
        %933 = vmatprep.subr.mxu0 %v806
        %934 = vmatpush1.msra.mxu0 %v805
        %935 = vmatprep.subr.mxu0 %v812
        %936 = vmatpush1.msra.mxu0 %v811
        %937 = vmatprep.subr.mxu0 %v818
        %938 = vmatpush1.msra.mxu0 %v817
        %939 = vmatprep.subr.mxu0 %v824
        %940 = vmatpush1.msra.mxu0 %v823
        %941 = vmatprep.subr.mxu0 %v830
        %942 = vmatpush1.msra.mxu0 %v829
        %943 = vmatprep.subr.mxu0 %v836
        %944 = vmatpush1.msra.mxu0 %v835
        %945 = vmatprep.subr.mxu0 %v842
        %946 = vmatpush1.msra.mxu0 %v841
        %947 = vmatprep.subr.mxu0 %v848
        %948 = vmatpush1.msra.mxu0 %v847
        %949 = vmatprep.subr.mxu0 %v854
        %950 = vmatpush1.msra.mxu0 %v853
        %951 = vmatprep.subr.mxu0 %v860
        %952 = vmatpush1.msra.mxu0 %v859
        %953 = vmatprep.subr.mxu0 %v866
        %954 = vmatpush1.msra.mxu0 %v865
        %955 = vmatprep.subr.mxu0 %v872
        %956 = vmatpush1.msra.mxu0 %v871
        %957 = vmatprep.subr.mxu0 %v878
        %958 = vmatpush1.msra.mxu0 %v877
        %959 = vmatprep.subr.mxu0 %v884
        %960 = vmatpush1.msra.mxu0 %v883
        %961 = vmatprep.subr.mxu0 %v890
        %962 = vmatpush1.msra.mxu0 %v889
        %963 = vmatprep.subr.mxu0 %v896
        %964 = vmatpush1.msra.mxu0 %v895
        %965 = vmatprep.subr.mxu0 0.0
        %966 = vmatpush1.msra.mxu0 0.0
        %967 = vmatprep.subr.mxu0 0.0
        %968 = vmatpush1.msra.mxu0 0.0
        %969 = vmatprep.subr.mxu0 0.0
        %970 = vmatpush1.msra.mxu0 0.0
        %971 = vmatprep.subr.mxu0 0.0
        %972 = vmatpush1.msra.mxu0 0.0
        %973 = vmatprep.subr.mxu0 0.0
        %974 = vmatpush1.msra.mxu0 0.0
        %975 = vmatprep.subr.mxu0 0.0
        %976 = vmatpush1.msra.mxu0 0.0
        %977 = vmatprep.subr.mxu0 0.0
        %978 = vmatpush1.msra.mxu0 0.0
        %979 = vmatprep.subr.mxu0 0.0
        %980 = vmatpush1.msra.mxu0 0.0
        %981 = vmatprep.subr.mxu0 0.0
        %982 = vmatpush1.msra.mxu0 0.0
        %983 = vmatprep.subr.mxu0 0.0
        %984 = vmatpush1.msra.mxu0 0.0
        %985 = vmatprep.subr.mxu0 0.0
        %986 = vmatpush1.msra.mxu0 0.0
        %987 = vmatprep.subr.mxu0 0.0
        %988 = vmatpush1.msra.mxu0 0.0
        %989 = vmatprep.subr.mxu0 0.0
        %990 = vmatpush1.msra.mxu0 0.0
        %991 = vmatprep.subr.mxu0 0.0
        %992 = vmatpush1.msra.mxu0 0.0
        %993 = vmatprep.subr.mxu0 0.0
        %994 = vmatpush1.msra.mxu0 0.0
        %995 = vmatprep.subr.mxu0 0.0
        %996 = vmatpush1.msra.mxu0 0.0
        %997 = vmatprep.mubr.f32.mxu0 0.0
        %998 = vmatmul.mubr.f32.gmra.mrb[0].mxu0 %v800
        %v999 = vpop.f32.mrb[0].mxu0
        %v1000 = vadd.f32 %v906, %v999
        %v1001 = vpop.f32.mrb[0].mxu0
        %v1002 = vadd.f32 %v910, %v1001
        %1003 = vmatprep.mubr.f32.mxu0 0.0
        %1004 = vmatmul.mubr.f32.gmra.mrb[0].mxu0 %v801
        %v1005 = vpop.f32.mrb[0].mxu0
        %v1006 = vadd.f32 %v906, %v1005
        %v1007 = vpop.f32.mrb[0].mxu0
        %v1008 = vadd.f32 %v910, %v1007
        %1009 = vmatprep.mubr.f32.mxu0 0.0
        %1010 = vmatmul.mubr.f32.gmra.mrb[0].mxu0 %v802
        %v1011 = vpop.f32.mrb[0].mxu0
        %v1012 = vadd.f32 %v906, %v1011
        %v1013 = vpop.f32.mrb[0].mxu0
        %v1014 = vadd.f32 %v910, %v1013
        %1015 = vmatprep.mubr.f32.mxu0 0.0
        %1016 = vmatmul.mubr.f32.gmra.mrb[0].mxu0 %v803
        %v1017 = vpop.f32.mrb[0].mxu0
        %v1018 = vadd.f32 %v906, %v1017
        %v1019 = vpop.f32.mrb[0].mxu0
        %v1020 = vadd.f32 %v910, %v1019
        %1021 = vmatprep.mubr.f32.mxu0 0.0
        %1022 = vmatmul.mubr.f32.gmra.mrb[0].mxu0 %v804
        %v1023 = vpop.f32.mrb[0].mxu0
        %v1024 = vadd.f32 %v906, %v1023
        %v1025 = vpop.f32.mrb[0].mxu0
        %v1026 = vadd.f32 %v910, %v1025
        %1027 = vdwg.mxu0
        %1028 = vmatprep.subr.mxu0 %v808
        %1029 = vmatpush1.msra.mxu0 %v807
        %1030 = vmatprep.subr.mxu0 %v814
        %1031 = vmatpush1.msra.mxu0 %v813
        %1032 = vmatprep.subr.mxu0 %v820
        %1033 = vmatpush1.msra.mxu0 %v819
        %1034 = vmatprep.subr.mxu0 %v826
        %1035 = vmatpush1.msra.mxu0 %v825
        %1036 = vmatprep.subr.mxu0 %v832
        %1037 = vmatpush1.msra.mxu0 %v831
        %1038 = vmatprep.subr.mxu0 %v838
        %1039 = vmatpush1.msra.mxu0 %v837
        %1040 = vmatprep.subr.mxu0 %v844
        %1041 = vmatpush1.msra.mxu0 %v843
        %1042 = vmatprep.subr.mxu0 %v850
        %1043 = vmatpush1.msra.mxu0 %v849
        %1044 = vmatprep.subr.mxu0 %v856
        %1045 = vmatpush1.msra.mxu0 %v855
        %1046 = vmatprep.subr.mxu0 %v862
        %1047 = vmatpush1.msra.mxu0 %v861
        %1048 = vmatprep.subr.mxu0 %v868
        %1049 = vmatpush1.msra.mxu0 %v867
        %1050 = vmatprep.subr.mxu0 %v874
        %1051 = vmatpush1.msra.mxu0 %v873
        %1052 = vmatprep.subr.mxu0 %v880
        %1053 = vmatpush1.msra.mxu0 %v879
        %1054 = vmatprep.subr.mxu0 %v886
        %1055 = vmatpush1.msra.mxu0 %v885
        %1056 = vmatprep.subr.mxu0 %v892
        %1057 = vmatpush1.msra.mxu0 %v891
        %1058 = vmatprep.subr.mxu0 %v898
        %1059 = vmatpush1.msra.mxu0 %v897
        %1060 = vmatprep.subr.mxu0 0.0
        %1061 = vmatpush1.msra.mxu0 0.0
        %1062 = vmatprep.subr.mxu0 0.0
        %1063 = vmatpush1.msra.mxu0 0.0
        %1064 = vmatprep.subr.mxu0 0.0
        %1065 = vmatpush1.msra.mxu0 0.0
        %1066 = vmatprep.subr.mxu0 0.0
        %1067 = vmatpush1.msra.mxu0 0.0
        %1068 = vmatprep.subr.mxu0 0.0
        %1069 = vmatpush1.msra.mxu0 0.0
        %1070 = vmatprep.subr.mxu0 0.0
        %1071 = vmatpush1.msra.mxu0 0.0
        %1072 = vmatprep.subr.mxu0 0.0
        %1073 = vmatpush1.msra.mxu0 0.0
        %1074 = vmatprep.subr.mxu0 0.0
        %1075 = vmatpush1.msra.mxu0 0.0
        %1076 = vmatprep.subr.mxu0 0.0
        %1077 = vmatpush1.msra.mxu0 0.0
        %1078 = vmatprep.subr.mxu0 0.0
        %1079 = vmatpush1.msra.mxu0 0.0
        %1080 = vmatprep.subr.mxu0 0.0
        %1081 = vmatpush1.msra.mxu0 0.0
        %1082 = vmatprep.subr.mxu0 0.0
        %1083 = vmatpush1.msra.mxu0 0.0
        %1084 = vmatprep.subr.mxu0 0.0
        %1085 = vmatpush1.msra.mxu0 0.0
        %1086 = vmatprep.subr.mxu0 0.0
        %1087 = vmatpush1.msra.mxu0 0.0
        %1088 = vmatprep.subr.mxu0 0.0
        %1089 = vmatpush1.msra.mxu0 0.0
        %1090 = vmatprep.subr.mxu0 0.0
        %1091 = vmatpush1.msra.mxu0 0.0
        %1092 = vmatprep.mubr.f32.mxu0 0.0
        %1093 = vmatmul.mubr.f32.gmra.mrb[0].mxu0 %v800
        %v1094 = vpop.f32.mrb[0].mxu0
        %v1095 = vadd.f32 %v914, %v1094
        %v1096 = vpop.f32.mrb[0].mxu0
        %v1097 = vadd.f32 %v918, %v1096
        %1098 = vmatprep.mubr.f32.mxu0 0.0
        %1099 = vmatmul.mubr.f32.gmra.mrb[0].mxu0 %v801
        %v1100 = vpop.f32.mrb[0].mxu0
        %v1101 = vadd.f32 %v914, %v1100
        %v1102 = vpop.f32.mrb[0].mxu0
        %v1103 = vadd.f32 %v918, %v1102
        %1104 = vmatprep.mubr.f32.mxu0 0.0
        %1105 = vmatmul.mubr.f32.gmra.mrb[0].mxu0 %v802
        %v1106 = vpop.f32.mrb[0].mxu0
        %v1107 = vadd.f32 %v914, %v1106
        %v1108 = vpop.f32.mrb[0].mxu0
        %v1109 = vadd.f32 %v918, %v1108
        %1110 = vmatprep.mubr.f32.mxu0 0.0
        %1111 = vmatmul.mubr.f32.gmra.mrb[0].mxu0 %v803
        %v1112 = vpop.f32.mrb[0].mxu0
        %v1113 = vadd.f32 %v914, %v1112
        %v1114 = vpop.f32.mrb[0].mxu0
        %v1115 = vadd.f32 %v918, %v1114
        %1116 = vmatprep.mubr.f32.mxu0 0.0
        %1117 = vmatmul.mubr.f32.gmra.mrb[0].mxu0 %v804
        %v1118 = vpop.f32.mrb[0].mxu0
        %v1119 = vadd.f32 %v914, %v1118
        %v1120 = vpop.f32.mrb[0].mxu0
        %v1121 = vadd.f32 %v918, %v1120
        %1122 = vdwg.mxu0
        %1123 = vmatprep.subr.mxu0 %v810
        %1124 = vmatpush1.msra.mxu0 %v809
        %1125 = vmatprep.subr.mxu0 %v816
        %1126 = vmatpush1.msra.mxu0 %v815
        %1127 = vmatprep.subr.mxu0 %v822
        %1128 = vmatpush1.msra.mxu0 %v821
        %1129 = vmatprep.subr.mxu0 %v828
        %1130 = vmatpush1.msra.mxu0 %v827
        %1131 = vmatprep.subr.mxu0 %v834
        %1132 = vmatpush1.msra.mxu0 %v833
        %1133 = vmatprep.subr.mxu0 %v840
        %1134 = vmatpush1.msra.mxu0 %v839
        %1135 = vmatprep.subr.mxu0 %v846
        %1136 = vmatpush1.msra.mxu0 %v845
        %1137 = vmatprep.subr.mxu0 %v852
        %1138 = vmatpush1.msra.mxu0 %v851
        %1139 = vmatprep.subr.mxu0 %v858
        %1140 = vmatpush1.msra.mxu0 %v857
        %1141 = vmatprep.subr.mxu0 %v864
        %1142 = vmatpush1.msra.mxu0 %v863
        %1143 = vmatprep.subr.mxu0 %v870
        %1144 = vmatpush1.msra.mxu0 %v869
        %1145 = vmatprep.subr.mxu0 %v876
        %1146 = vmatpush1.msra.mxu0 %v875
        %1147 = vmatprep.subr.mxu0 %v882
        %1148 = vmatpush1.msra.mxu0 %v881
        %1149 = vmatprep.subr.mxu0 %v888
        %1150 = vmatpush1.msra.mxu0 %v887
        %1151 = vmatprep.subr.mxu0 %v894
        %1152 = vmatpush1.msra.mxu0 %v893
        %1153 = vmatprep.subr.mxu0 %v900
        %1154 = vmatpush1.msra.mxu0 %v899
        %1155 = vmatprep.subr.mxu0 0.0
        %1156 = vmatpush1.msra.mxu0 0.0
        %1157 = vmatprep.subr.mxu0 0.0
        %1158 = vmatpush1.msra.mxu0 0.0
        %1159 = vmatprep.subr.mxu0 0.0
        %1160 = vmatpush1.msra.mxu0 0.0
        %1161 = vmatprep.subr.mxu0 0.0
        %1162 = vmatpush1.msra.mxu0 0.0
        %1163 = vmatprep.subr.mxu0 0.0
        %1164 = vmatpush1.msra.mxu0 0.0
        %1165 = vmatprep.subr.mxu0 0.0
        %1166 = vmatpush1.msra.mxu0 0.0
        %1167 = vmatprep.subr.mxu0 0.0
        %1168 = vmatpush1.msra.mxu0 0.0
        %1169 = vmatprep.subr.mxu0 0.0
        %1170 = vmatpush1.msra.mxu0 0.0
        %1171 = vmatprep.subr.mxu0 0.0
        %1172 = vmatpush1.msra.mxu0 0.0
        %1173 = vmatprep.subr.mxu0 0.0
        %1174 = vmatpush1.msra.mxu0 0.0
        %1175 = vmatprep.subr.mxu0 0.0
        %1176 = vmatpush1.msra.mxu0 0.0
        %1177 = vmatprep.subr.mxu0 0.0
        %1178 = vmatpush1.msra.mxu0 0.0
        %1179 = vmatprep.subr.mxu0 0.0
        %1180 = vmatpush1.msra.mxu0 0.0
        %1181 = vmatprep.subr.mxu0 0.0
        %1182 = vmatpush1.msra.mxu0 0.0
        %1183 = vmatprep.subr.mxu0 0.0
        %1184 = vmatpush1.msra.mxu0 0.0
        %1185 = vmatprep.subr.mxu0 0.0
        %1186 = vmatpush1.msra.mxu0 0.0
        %1187 = vmatprep.mubr.f32.mxu0 0.0
        %1188 = vmatmul.mubr.f32.gmra.mrb[0].mxu0 %v800
        %v1189 = vpop.f32.mrb[0].mxu0
        %v1190 = vadd.f32 %v922, %v1189
        %v1191 = vpop.f32.mrb[0].mxu0
        %v1192 = vadd.f32 %v926, %v1191
        %1193 = vmatprep.mubr.f32.mxu0 0.0
        %1194 = vmatmul.mubr.f32.gmra.mrb[0].mxu0 %v801
        %v1195 = vpop.f32.mrb[0].mxu0
        %v1196 = vadd.f32 %v922, %v1195
        %v1197 = vpop.f32.mrb[0].mxu0
        %v1198 = vadd.f32 %v926, %v1197
        %1199 = vmatprep.mubr.f32.mxu0 0.0
        %1200 = vmatmul.mubr.f32.gmra.mrb[0].mxu0 %v802
        %v1201 = vpop.f32.mrb[0].mxu0
        %v1202 = vadd.f32 %v922, %v1201
        %v1203 = vpop.f32.mrb[0].mxu0
        %v1204 = vadd.f32 %v926, %v1203
        %1205 = vmatprep.mubr.f32.mxu0 0.0
        %1206 = vmatmul.mubr.f32.gmra.mrb[0].mxu0 %v803
        %v1207 = vpop.f32.mrb[0].mxu0
        %v1208 = vadd.f32 %v922, %v1207
        %v1209 = vpop.f32.mrb[0].mxu0
        %v1210 = vadd.f32 %v926, %v1209
        %1211 = vmatprep.mubr.f32.mxu0 0.0
        %1212 = vmatmul.mubr.f32.gmra.mrb[0].mxu0 %v804
        %v1213 = vpop.f32.mrb[0].mxu0
        %v1214 = vadd.f32 %v922, %v1213
        %v1215 = vpop.f32.mrb[0].mxu0
        %v1216 = vadd.f32 %v926, %v1215
        %1217 = vdwg.mxu0
        %v1218 = vmax.f32 %v1000, 0.0
        %v1219 = vmax.f32 %v1002, 0.0
        %v1220 = vmax.f32 %v1095, 0.0
        %v1221 = vmax.f32 %v1097, 0.0
        %v1222 = vmax.f32 %v1190, 0.0
        %v1223 = vmax.f32 %v1192, 0.0
        %v1224 = vmax.f32 %v1006, 0.0
        %v1225 = vmax.f32 %v1008, 0.0
        %v1226 = vmax.f32 %v1101, 0.0
        %v1227 = vmax.f32 %v1103, 0.0
        %v1228 = vmax.f32 %v1196, 0.0
        %v1229 = vmax.f32 %v1198, 0.0
        %v1230 = vmax.f32 %v1012, 0.0
        %v1231 = vmax.f32 %v1014, 0.0
        %v1232 = vmax.f32 %v1107, 0.0
        %v1233 = vmax.f32 %v1109, 0.0
        %v1234 = vmax.f32 %v1202, 0.0
        %v1235 = vmax.f32 %v1204, 0.0
        %v1236 = vmax.f32 %v1018, 0.0
        %v1237 = vmax.f32 %v1020, 0.0
        %v1238 = vmax.f32 %v1113, 0.0
        %v1239 = vmax.f32 %v1115, 0.0
        %v1240 = vmax.f32 %v1208, 0.0
        %v1241 = vmax.f32 %v1210, 0.0
        %v1242 = vmax.f32 %v1024, 0.0
        %v1243 = vmax.f32 %v1026, 0.0
        %v1244 = vmax.f32 %v1119, 0.0
        %v1245 = vmax.f32 %v1121, 0.0
        %v1246 = vmax.f32 %v1214, 0.0
        %v1247 = vmax.f32 %v1216, 0.0
        %v1248 = vadd.f32 %v1218, %v1224
        %v1249 = vadd.f32 %v1248, %v1230
        %v1250 = vadd.f32 %v1249, %v1236
        %v1251 = vsel %vm464, %v1242, 0.0
        %v1252 = vadd.f32 %v1250, %v1251
        %v1253 = vrot.slane %v1252, 4
        %v1254 = vadd.f32 %v1252, %v1253
        %v1255 = vrot.slane %v1254, 2
        %v1256 = vadd.f32 %v1254, %v1255
        %v1257 = vrot.slane %v1256, 1
        %v1258 = vadd.f32 %v1256, %v1257
        %v1259 = vadd.f32 %v1219, %v1225
        %v1260 = vadd.f32 %v1259, %v1231
        %v1261 = vadd.f32 %v1260, %v1237
        %v1262 = vsel %vm464, %v1243, 0.0
        %v1263 = vadd.f32 %v1261, %v1262
        %v1264 = vrot.slane %v1263, 4
        %v1265 = vadd.f32 %v1263, %v1264
        %v1266 = vrot.slane %v1265, 2
        %v1267 = vadd.f32 %v1265, %v1266
        %v1268 = vrot.slane %v1267, 1
        %v1269 = vadd.f32 %v1267, %v1268
        %v1270 = vadd.f32 %v1220, %v1226
        %v1271 = vadd.f32 %v1270, %v1232
        %v1272 = vadd.f32 %v1271, %v1238
        %v1273 = vsel %vm464, %v1244, 0.0
        %v1274 = vadd.f32 %v1272, %v1273
        %v1275 = vrot.slane %v1274, 4
        %v1276 = vadd.f32 %v1274, %v1275
        %v1277 = vrot.slane %v1276, 2
        %v1278 = vadd.f32 %v1276, %v1277
        %v1279 = vrot.slane %v1278, 1
        %v1280 = vadd.f32 %v1278, %v1279
        %v1281 = vadd.f32 %v1221, %v1227
        %v1282 = vadd.f32 %v1281, %v1233
        %v1283 = vadd.f32 %v1282, %v1239
        %v1284 = vsel %vm464, %v1245, 0.0
        %v1285 = vadd.f32 %v1283, %v1284
        %v1286 = vrot.slane %v1285, 4
        %v1287 = vadd.f32 %v1285, %v1286
        %v1288 = vrot.slane %v1287, 2
        %v1289 = vadd.f32 %v1287, %v1288
        %v1290 = vrot.slane %v1289, 1
        %v1291 = vadd.f32 %v1289, %v1290
        %v1292 = vadd.f32 %v1222, %v1228
        %v1293 = vadd.f32 %v1292, %v1234
        %v1294 = vadd.f32 %v1293, %v1240
        %v1295 = vsel %vm464, %v1246, 0.0
        %v1296 = vadd.f32 %v1294, %v1295
        %v1297 = vrot.slane %v1296, 4
        %v1298 = vadd.f32 %v1296, %v1297
        %v1299 = vrot.slane %v1298, 2
        %v1300 = vadd.f32 %v1298, %v1299
        %v1301 = vrot.slane %v1300, 1
        %v1302 = vadd.f32 %v1300, %v1301
        %v1303 = vadd.f32 %v1223, %v1229
        %v1304 = vadd.f32 %v1303, %v1235
        %v1305 = vadd.f32 %v1304, %v1241
        %v1306 = vsel %vm464, %v1247, 0.0
        %v1307 = vadd.f32 %v1305, %v1306
        %v1308 = vrot.slane %v1307, 4
        %v1309 = vadd.f32 %v1307, %v1308
        %v1310 = vrot.slane %v1309, 2
        %v1311 = vadd.f32 %v1309, %v1310
        %v1312 = vrot.slane %v1311, 1
        %v1313 = vadd.f32 %v1311, %v1312
        %v1314 = vrcp.pop 36.0
        %v1315 = vmul.f32 %v1258, %v1314
        %v1316 = vmul.f32 %v1269, %v1314
        %v1317 = vmul.f32 %v1280, %v1314
        %v1318 = vmul.f32 %v1291, %v1314
        %v1319 = vmul.f32 %v1302, %v1314
        %v1320 = vmul.f32 %v1313, %v1314
        %v1327 = vcombine.low %v1315, %v1316
        %v1328 = vcombine.low %v1317, %v1318
        %v1329 = vcombine.low %v1319, %v1320
        %v1331 = vunpack.c.l.s4 1966171168
        %v1332 = vunpack.c.0.s8 %v1331
        %v1333 = vlaneseq
        %v1334 = vshrl.u32 %v1333, 7
        %v1335 = vsub.s32 %v1332, %v1334
        %v1336 = vrot.slane %v1327, %v1335
        %v1338 = vunpack.c.l.s4 1966171168
        %v1339 = vunpack.c.0.s8 %v1338
        %v1340 = vlaneseq
        %v1341 = vshrl.u32 %v1340, 7
        %v1342 = vsub.s32 %v1339, %v1341
        %v1343 = vrot.slane %v1328, %v1342
        %v1345 = vunpack.c.l.s4 1966171168
        %v1346 = vunpack.c.0.s8 %v1345
        %v1347 = vlaneseq
        %v1348 = vshrl.u32 %v1347, 7
        %v1349 = vsub.s32 %v1346, %v1348
        %v1350 = vrot.slane %v1329, %v1349
        %v1351 = vcombine.low %v1336, %v1343
        %v1353 = vunpack.c.l.s4 1966171168
        %v1354 = vunpack.c.0.s8 %v1353
        %v1355 = vlaneseq
        %v1356 = vshrl.u32 %v1355, 7
        %v1357 = vsub.s32 %v1354, %v1356
        %v1358 = vrot.slane %v1351, %v1357
        %v1360 = vunpack.c.l.s4 1966171168
        %v1361 = vunpack.c.0.s8 %v1360
        %v1362 = vlaneseq
        %v1363 = vshrl.u32 %v1362, 7
        %v1364 = vsub.s32 %v1361, %v1363
        %v1365 = vrot.slane %v1350, %v1364
        %v1366 = vcombine.low %v1358, %v1365
        %v1368 = vlaneseq
        %vm1369 = vcmp.ge.s32.totalorder %v1368, 0
        %vm1370 = vcmp.lt.s32.totalorder %v1368, 768
        %vm1371 = vmand %vm1369, %vm1370
        %1372 = vst.msk [vmem:[%s296] sm:$0x3f] %vm1371, %v1366
        %s1373 = sand.u32 %s163, 1
        %s1374 = scalar_lea.sflag [#allocation4], %s1373
        %s1375 = sand.u32 %s163, 1
        %s1376 = smul.addr %s1375, 6
        %s1377 = scalar_lea.vmem [#allocation8], %s1376
        // Predicated region
        $region57: #{tpu_custom_call.1} parent=43 // pred_check
          %p1378 = pneg %p173
        $region58: #{tpu_custom_call.1} parent=43 // pred_check_branch
          %1380 = sbr.rel (%p1378) target = $region60
        $region59: #{tpu_custom_call.1} parent=43 // pred_region
          %s1382 = ssub.s32 96, 96
          %1383 = vsyncadd %s1374, %s1382
          %s1384 = smul.addr %s24, 6
          %s1385 = smul.addr %s1384, 16
          %s1386 = scalar_lea.hbm %s6, %s1385
          %s1388 = sshll.u32 %s1377, 4
          %s1389 = int_to_ptr.vmem [resolvable:$true] %s1388
          %1391 = dma.vmem_to_hbm [thread:$0]  %s1389, 96, %s1386, %s1374
        $region60: #{tpu_custom_call.1} parent=43 // pred_fallthru
          _
      $region44: #{tpu_custom_call.1} parent=5 // pred_fallthru
        _
      %p1392 = scmp.le.s32.totalorder 2, %s19
      // Predicated region
      $region61: #{tpu_custom_call.1} parent=5 // pred_check
        %p1393 = pneg %p1392
      $region62: #{tpu_custom_call.1} parent=5 // pred_check_branch
        %1395 = sbr.rel (%p1393) target = $region64
      $region63: #{tpu_custom_call.1} parent=5 // pred_region
        %s1396 = ssub.s32 %s19, 2
        // Predicated region
        $region65: #{tpu_custom_call.1} parent=63 // pred_check
          %p1397 = pneg %p179
        $region66: #{tpu_custom_call.1} parent=63 // pred_check_branch
          %1399 = sbr.rel (%p1397) target = $region68
        $region67: #{tpu_custom_call.1} parent=63 // pred_region
          %s1400 = sand.u32 %s164, 1
          %s1401 = scalar_lea.sflag [#allocation4], %s1400
          %s1402 = sand.u32 %s164, 1
          %s1403 = smul.addr %s1402, 6
          %s1404 = scalar_lea.vmem [#allocation8], %s1403
          %1405 = dma.done %s1401, 96
        $region68: #{tpu_custom_call.1} parent=63 // pred_fallthru
          _
      $region64: #{tpu_custom_call.1} parent=5 // pred_fallthru
        _
    $region6: #{tpu_custom_call.1} parent=1 // loop_footer
      %s23 = sadd.s32 1, %s19
    $region7: #{tpu_custom_call.1} parent=1 // loop_footer_branch
      %18 = sbr.rel target = $region3
    $region8: #{tpu_custom_call.1} parent=1 // loop_exit
      _
    %1406 = vsyncpa [#allocation3], 1
    %s1407 = scalar_lea.sflag [#allocation3], 1
    %1408 = vsyncpa %s1407, 1
    %1409 = vsyncpa [#allocation6], 1
    %1410 = vsyncpa [#allocation4], 1
    %s1411 = scalar_lea.sflag [#allocation4], 1
    %1412 = vsyncpa %s1411, 1

</llo_original>
